<compile_context>
chip_gen: v5e
topology: v5e:2x2
jax: 0.10.0
libtpu: 0.0.40
codegen_flags: <defaults>
</compile_context>

<pallas_src>
import functools

import jax
import jax.numpy as jnp
import numpy as np
from jax.experimental import pallas as pl
from jax.experimental.pallas import tpu as pltpu


# ----------------------------------------------------------------------------
# Kernel: one residual attention block for one row block (block_batch seqs),
# invoked once per (row_block, layer) grid point.  The activation is carried
# across the layer axis in x_carry (f32 VMEM scratch).
# ----------------------------------------------------------------------------
def transformer_block_kernel(
    x_ref,                          # (Nt, D)   input rows, read only at layer 0
    ln1_w_ref, ln1_b_ref,           # (1, 1, D) f32
    w_q_ref, b_q_ref,               # (1, D, D) bf16 (scale folded), (1, 1, D) f32
    w_k_ref, b_k_ref,
    w_v_ref, b_v_ref,
    w_o_ref, b_o_ref,               # (1, D, D) bf16, (1, 1, D) f32
    ln2_w_ref, ln2_b_ref,           # (1, 1, D) f32
    w_fc_ref, b_fc_ref,             # (1, D, 4D) bf16, (1, 1, 4D) f32
    w_pr_ref, b_pr_ref,             # (1, 4D, D) bf16, (1, 1, D) f32
    o_ref,                          # (Nt, D)   written only at the last layer
    x_carry, attn_buf,              # VMEM scratch (Nt, D) f32
    *, n_head, block_batch, seq_len,
):
    layer = pl.program_id(1)
    n_layers = pl.num_programs(1)

    @pl.when(layer == 0)
    def _():
        x_carry[...] = x_ref[...].astype(jnp.float32)

    x = x_carry[...]                                # (Nt, D) f32
    n_rows, d_model = x.shape
    d_head = d_model // n_head
    bt, s = block_batch, seq_len

    def layernorm(v, w_ref, b_ref):
        mu = jnp.mean(v, axis=-1, keepdims=True)
        var = jnp.mean((v - mu) ** 2, axis=-1, keepdims=True)
        return (v - mu) * jax.lax.rsqrt(var + 1e-5) * w_ref[0] + b_ref[0]

    # --- attention branch --------------------------------------------------
    h = layernorm(x, ln1_w_ref, ln1_b_ref)
    hb = h.astype(jnp.bfloat16)
    # Q/K/V from pre-split, pre-transposed (D, D) slabs (no lane-splits of a 3D
    # wide qkv, no in-kernel weight transpose).  Scale is folded into w_q/b_q.
    q = jnp.dot(hb, w_q_ref[0], preferred_element_type=jnp.float32) + b_q_ref[0]
    k = jnp.dot(hb, w_k_ref[0], preferred_element_type=jnp.float32) + b_k_ref[0]
    v = jnp.dot(hb, w_v_ref[0], preferred_element_type=jnp.float32) + b_v_ref[0]

    for head in range(n_head):                      # unrolled (n_head is static)
        lo, hi = head * d_head, (head + 1) * d_head
        q3 = q[:, lo:hi].reshape(bt, s, d_head).astype(jnp.bfloat16)
        k3 = k[:, lo:hi].reshape(bt, s, d_head).astype(jnp.bfloat16)
        v3 = v[:, lo:hi].reshape(bt, s, d_head).astype(jnp.bfloat16)
        scores = jnp.einsum("bqd,bkd->bqk", q3, k3,
                            preferred_element_type=jnp.float32)     # (bt, s, s)
        scores = scores - jnp.max(scores, axis=-1, keepdims=True)
        p = jnp.exp(scores)
        p = p * pl.reciprocal(jnp.sum(p, axis=-1, keepdims=True), approx=True)
        o3 = jnp.einsum("bqk,bkd->bqd", p.astype(jnp.bfloat16), v3,
                        preferred_element_type=jnp.float32)         # (bt, s, dh)
        attn_buf[:, lo:hi] = o3.reshape(n_rows, d_head)

    attn = jnp.dot(attn_buf[...].astype(jnp.bfloat16), w_o_ref[0],
                   preferred_element_type=jnp.float32) + b_o_ref[0]
    x = x + attn

    # --- MLP branch ----------------------------------------------------------
    h2 = layernorm(x, ln2_w_ref, ln2_b_ref)
    f = jnp.dot(h2.astype(jnp.bfloat16), w_fc_ref[0],
                preferred_element_type=jnp.float32) + b_fc_ref[0]   # (Nt, 4D)
    f = f * jax.nn.sigmoid(1.702 * f)                               # QuickGELU
    m = jnp.dot(f.astype(jnp.bfloat16), w_pr_ref[0],
                preferred_element_type=jnp.float32) + b_pr_ref[0]   # (Nt, D)
    x = x + m

    x_carry[...] = x

    @pl.when(layer == n_layers - 1)
    def _():
        o_ref[...] = x.astype(o_ref.dtype)


# ----------------------------------------------------------------------------
# Wrapper
# ----------------------------------------------------------------------------
_WEIGHT_ORDER = ("ln1_w", "ln1_b", "w_q", "b_q", "w_k", "b_k", "w_v", "b_v",
                 "w_o", "b_o", "ln2_w", "ln2_b", "w_fc", "b_fc", "w_proj",
                 "b_proj")


def transformer_pallas(x_rows, packed, *, n_head, batch, seq, block_batch=None):
    """x_rows: (B*S, D) rows (sequence-major within each batch element)."""
    n_total, d_model = x_rows.shape
    assert n_total == batch * seq
    n_layers = packed["w_q"].shape[0]

    if block_batch is None:
        block_batch = batch
    assert batch % block_batch == 0
    n_t = block_batch * seq
    # (8,128) rule: the row-block must be sublane aligned unless it spans all rows.
    assert n_t % 8 == 0 or block_batch == batch

    kernel = functools.partial(transformer_block_kernel, n_head=n_head,
                               block_batch=block_batch, seq_len=seq)

    weight_args = [packed[name] for name in _WEIGHT_ORDER]
    # Per-layer weight blocks, indexed by the layer grid coordinate so the
    # pipeline prefetches the next layer's weights while this one computes.
    w_specs = [pl.BlockSpec((1,) + w.shape[1:], lambda r, l: (l, 0, 0))
               for w in weight_args]
    x_spec = pl.BlockSpec((n_t, d_model), lambda r, l: (r, 0))
    out_spec = pl.BlockSpec((n_t, d_model), lambda r, l: (r, 0))

    d4 = 4 * d_model
    matmul_flops = 2 * n_total * n_layers * (3 * d_model * d_model
                                             + d_model * d_model
                                             + 2 * d_model * d4)
    attn_flops = 4 * n_total * n_layers * seq * d_model
    cost = pl.CostEstimate(
        flops=int(matmul_flops + attn_flops),
        transcendentals=int(n_total * n_layers * (n_head * seq + d4)),
        bytes_accessed=int((batch // block_batch) * n_layers
                           * (4 * d_model * d_model + 2 * d_model * d4) * 2
                           + 2 * n_total * d_model * 4),
    )

    return pl.pallas_call(
        kernel,
        out_shape=jax.ShapeDtypeStruct((n_total, d_model), x_rows.dtype),
        grid_spec=pltpu.PrefetchScalarGridSpec(
            num_scalar_prefetch=0,
            grid=(batch // block_batch, n_layers),
            in_specs=[x_spec] + w_specs,
            out_specs=out_spec,
            scratch_shapes=[pltpu.VMEM((n_t, d_model), jnp.float32),   # carry
                            pltpu.VMEM((n_t, d_model), jnp.float32)],  # attn
        ),
        compiler_params=pltpu.CompilerParams(
            dimension_semantics=("parallel", "arbitrary"),
            vmem_limit_bytes=64 * 1024 * 1024),
        cost_estimate=cost,
    )(x_rows, *weight_args)


def transformer_forward(x_sbd, packed, n_head, block_batch=None):
    """x_sbd: (S, B, D) — torch sequence-first layout."""
    s, b, d = x_sbd.shape
    x_rows = jnp.transpose(x_sbd, (1, 0, 2)).reshape(b * s, d)
    y_rows = transformer_pallas(x_rows, packed, n_head=n_head, batch=b, seq=s,
                                block_batch=block_batch)
    return jnp.transpose(y_rows.reshape(b, s, d), (1, 0, 2))


# ----------------------------------------------------------------------------
# Parameters: torch-layout f32 params + packing into kernel layout
# (stacked over layers, pre-transposed, pre-split QKV, scale folded, bf16).
# ----------------------------------------------------------------------------
def make_layer_params(key, d_model):
    ks = jax.random.split(key, 8)
    s = 0.02
    return {
        "ln1_w": jnp.ones((1, d_model), jnp.float32),
        "ln1_b": jnp.zeros((1, d_model), jnp.float32),
        "w_in": jax.random.normal(ks[0], (3 * d_model, d_model), jnp.float32) * s,
        "b_in": jax.random.normal(ks[1], (1, 3 * d_model), jnp.float32) * s,
        "w_out": jax.random.normal(ks[2], (d_model, d_model), jnp.float32) * s,
        "b_out": jax.random.normal(ks[3], (1, d_model), jnp.float32) * s,
        "ln2_w": jnp.ones((1, d_model), jnp.float32),
        "ln2_b": jnp.zeros((1, d_model), jnp.float32),
        "w_fc": jax.random.normal(ks[4], (4 * d_model, d_model), jnp.float32) * s,
        "b_fc": jax.random.normal(ks[5], (1, 4 * d_model), jnp.float32) * s,
        "w_proj": jax.random.normal(ks[6], (d_model, 4 * d_model), jnp.float32) * s,
        "b_proj": jax.random.normal(ks[7], (1, d_model), jnp.float32) * s,
    }


def pack_params(all_params, n_head):
    d = all_params[0]["w_in"].shape[1]
    d_head = d // n_head
    scale = 1.0 / float(np.sqrt(d_head))
    wdt = jnp.bfloat16

    def stack(fn):
        return jnp.stack([fn(p) for p in all_params], axis=0)

    return {
        "ln1_w": stack(lambda p: p["ln1_w"]),
        "ln1_b": stack(lambda p: p["ln1_b"]),
        "w_q": stack(lambda p: (p["w_in"][:d, :].T * scale).astype(wdt)),
        "b_q": stack(lambda p: p["b_in"][:, :d] * scale),
        "w_k": stack(lambda p: p["w_in"][d:2 * d, :].T.astype(wdt)),
        "b_k": stack(lambda p: p["b_in"][:, d:2 * d]),
        "w_v": stack(lambda p: p["w_in"][2 * d:, :].T.astype(wdt)),
        "b_v": stack(lambda p: p["b_in"][:, 2 * d:]),
        "w_o": stack(lambda p: p["w_out"].T.astype(wdt)),
        "b_o": stack(lambda p: p["b_out"]),
        "ln2_w": stack(lambda p: p["ln2_w"]),
        "ln2_b": stack(lambda p: p["ln2_b"]),
        "w_fc": stack(lambda p: p["w_fc"].T.astype(wdt)),      # (D, 4D)
        "b_fc": stack(lambda p: p["b_fc"]),
        "w_proj": stack(lambda p: p["w_proj"].T.astype(wdt)),  # (4D, D)
        "b_proj": stack(lambda p: p["b_proj"]),
    }


# ----------------------------------------------------------------------------
# Pure-JAX f32 reference (mirrors the PyTorch semantics).
# ----------------------------------------------------------------------------
def reference_forward(x_sbd, all_params, n_head):
    def ln(v, w, b):
        mu = jnp.mean(v, axis=-1, keepdims=True)
        var = jnp.mean((v - mu) ** 2, axis=-1, keepdims=True)
        return (v - mu) / jnp.sqrt(var + 1e-5) * w[0] + b[0]

    x = jnp.transpose(x_sbd, (1, 0, 2))  # (B, S, D)
    b, s, d = x.shape
    dh = d // n_head
    for p in all_params:
        h = ln(x, p["ln1_w"], p["ln1_b"])
        qkv = h @ p["w_in"].T + p["b_in"][0]
        q, k, v = qkv[..., :d], qkv[..., d:2 * d], qkv[..., 2 * d:]
        q = q.reshape(b, s, n_head, dh).transpose(0, 2, 1, 3) / np.sqrt(dh)
        k = k.reshape(b, s, n_head, dh).transpose(0, 2, 1, 3)
        v = v.reshape(b, s, n_head, dh).transpose(0, 2, 1, 3)
        sc = jnp.einsum("bhqd,bhkd->bhqk", q, k)
        a = jax.nn.softmax(sc, axis=-1)
        o = jnp.einsum("bhqk,bhkd->bhqd", a, v)
        o = o.transpose(0, 2, 1, 3).reshape(b, s, d)
        x = x + (o @ p["w_out"].T + p["b_out"][0])
        h2 = ln(x, p["ln2_w"], p["ln2_b"])
        f = h2 @ p["w_fc"].T + p["b_fc"][0]
        f = f * jax.nn.sigmoid(1.702 * f)
        x = x + (f @ p["w_proj"].T + p["b_proj"][0])
    return jnp.transpose(x, (1, 0, 2))


if __name__ == "__main__":
    # Small shapes consistent with the module: width=64, layers=2, heads=4,
    # sequence length S=8 (multiple of 8), batch B=4.  Input layout (S, B, D).
    S, B, D, H, L = 8, 4, 64, 4, 2

    key = jax.random.PRNGKey(0)
    kx, kp = jax.random.split(key)
    x = jax.random.normal(kx, (S, B, D), jnp.float32)

    layer_keys = jax.random.split(kp, L)
    all_params = [make_layer_params(layer_keys[i], D) for i in range(L)]
    packed = pack_params(all_params, H)

    out = transformer_forward(x, packed, n_head=H, block_batch=2)
    out = jax.block_until_ready(out)

    ref = reference_forward(x, all_params, H)
    # bf16 matmul operands inside the kernel (f32 accumulation) -> looser tol.
    np.testing.assert_allclose(np.asarray(out), np.asarray(ref),
                               rtol=2e-2, atol=2e-2)

    print("KERNEL_OK")
</pallas_src>

<mosaic_0001>
module attributes {stable_mosaic.version = 11 : i64} {
  func.func @transformer_block_kernel(%arg0: i32, %arg1: i32, %arg2: memref<16x64xf32, #tpu.memory_space<vmem>>, %arg3: memref<1x1x64xf32, #tpu.memory_space<vmem>>, %arg4: memref<1x1x64xf32, #tpu.memory_space<vmem>>, %arg5: memref<1x64x64xbf16, #tpu.memory_space<vmem>>, %arg6: memref<1x1x64xf32, #tpu.memory_space<vmem>>, %arg7: memref<1x64x64xbf16, #tpu.memory_space<vmem>>, %arg8: memref<1x1x64xf32, #tpu.memory_space<vmem>>, %arg9: memref<1x64x64xbf16, #tpu.memory_space<vmem>>, %arg10: memref<1x1x64xf32, #tpu.memory_space<vmem>>, %arg11: memref<1x64x64xbf16, #tpu.memory_space<vmem>>, %arg12: memref<1x1x64xf32, #tpu.memory_space<vmem>>, %arg13: memref<1x1x64xf32, #tpu.memory_space<vmem>>, %arg14: memref<1x1x64xf32, #tpu.memory_space<vmem>>, %arg15: memref<1x64x256xbf16, #tpu.memory_space<vmem>>, %arg16: memref<1x1x256xf32, #tpu.memory_space<vmem>>, %arg17: memref<1x256x64xbf16, #tpu.memory_space<vmem>>, %arg18: memref<1x1x64xf32, #tpu.memory_space<vmem>>, %arg19: memref<16x64xf32, #tpu.memory_space<vmem>>, %arg20: memref<16x64xf32, #tpu.memory_space<vmem>>, %arg21: memref<16x64xf32, #tpu.memory_space<vmem>>) attributes {dimension_semantics = [#tpu.dimension_semantics<parallel>, #tpu.dimension_semantics<arbitrary>], iteration_bounds = array<i64: 2, 2>, scalar_prefetch = 0 : i64, scratch_operands = 2 : i64, tpu.core_type = #tpu.core_type<tc>, window_params = [{transform_indices = @transform_0, window_bounds = array<i64: 16, 64>}, {transform_indices = @transform_1, window_bounds = array<i64: 1, 1, 64>}, {transform_indices = @transform_2, window_bounds = array<i64: 1, 1, 64>}, {transform_indices = @transform_3, window_bounds = array<i64: 1, 64, 64>}, {transform_indices = @transform_4, window_bounds = array<i64: 1, 1, 64>}, {transform_indices = @transform_5, window_bounds = array<i64: 1, 64, 64>}, {transform_indices = @transform_6, window_bounds = array<i64: 1, 1, 64>}, {transform_indices = @transform_7, window_bounds = array<i64: 1, 64, 64>}, {transform_indices = @transform_8, window_bounds = array<i64: 1, 1, 64>}, {transform_indices = @transform_9, window_bounds = array<i64: 1, 64, 64>}, {transform_indices = @transform_10, window_bounds = array<i64: 1, 1, 64>}, {transform_indices = @transform_11, window_bounds = array<i64: 1, 1, 64>}, {transform_indices = @transform_12, window_bounds = array<i64: 1, 1, 64>}, {transform_indices = @transform_13, window_bounds = array<i64: 1, 64, 256>}, {transform_indices = @transform_14, window_bounds = array<i64: 1, 1, 256>}, {transform_indices = @transform_15, window_bounds = array<i64: 1, 256, 64>}, {transform_indices = @transform_16, window_bounds = array<i64: 1, 1, 64>}, {transform_indices = @transform_17, window_bounds = array<i64: 16, 64>}]} {
    %c0_i32 = arith.constant 0 : i32
    %0 = arith.cmpi eq, %arg1, %c0_i32 : i32
    %1 = arith.extui %0 : i1 to i32
    %c0_i32_0 = arith.constant 0 : i32
    %2 = arith.cmpi ne, %1, %c0_i32_0 : i32
    scf.if %2 {
      %c0_93 = arith.constant 0 : index
      %c0_94 = arith.constant 0 : index
      %213 = vector.load %arg2[%c0_93, %c0_94] : memref<16x64xf32, #tpu.memory_space<vmem>>, vector<16x64xf32>
      %c0_95 = arith.constant 0 : index
      %c0_96 = arith.constant 0 : index
      %214 = vector.load %arg20[%c0_95, %c0_96] : memref<16x64xf32, #tpu.memory_space<vmem>>, vector<16x64xf32>
      tpu.vector_store %arg20[%c0_95, %c0_96], %213 {strides = array<i32>} : memref<16x64xf32, #tpu.memory_space<vmem>>, vector<16x64xf32>,
    } else {
    }
    %c0 = arith.constant 0 : index
    %c0_1 = arith.constant 0 : index
    %3 = vector.load %arg20[%c0, %c0_1] : memref<16x64xf32, #tpu.memory_space<vmem>>, vector<16x64xf32>
    %cst = arith.constant dense<0.000000e+00> : vector<16xf32>
    %4 = vector.multi_reduction <add>, %3, %cst [1] : vector<16x64xf32> to vector<16xf32>
    %5 = vector.shape_cast %4 : vector<16xf32> to vector<16x1xf32>
    %cst_2 = arith.constant 6.400000e+01 : f32
    %6 = vector.broadcast %cst_2 : f32 to vector<16x1xf32>
    %7 = arith.divf %5, %6 : vector<16x1xf32>
    %8 = vector.broadcast %7 : vector<16x1xf32> to vector<16x64xf32>
    %9 = arith.subf %3, %8 : vector<16x64xf32>
    %10 = arith.mulf %9, %9 : vector<16x64xf32>
    %cst_3 = arith.constant dense<0.000000e+00> : vector<16xf32>
    %11 = vector.multi_reduction <add>, %10, %cst_3 [1] : vector<16x64xf32> to vector<16xf32>
    %12 = vector.shape_cast %11 : vector<16xf32> to vector<16x1xf32>
    %cst_4 = arith.constant 6.400000e+01 : f32
    %13 = vector.broadcast %cst_4 : f32 to vector<16x1xf32>
    %14 = arith.divf %12, %13 : vector<16x1xf32>
    %15 = vector.broadcast %7 : vector<16x1xf32> to vector<16x64xf32>
    %16 = arith.subf %3, %15 : vector<16x64xf32>
    %cst_5 = arith.constant 9.99999974E-6 : f32
    %17 = vector.broadcast %cst_5 : f32 to vector<16x1xf32>
    %18 = arith.addf %14, %17 : vector<16x1xf32>
    %19 = math.rsqrt %18 : vector<16x1xf32>
    %20 = vector.broadcast %19 : vector<16x1xf32> to vector<16x64xf32>
    %21 = arith.mulf %16, %20 : vector<16x64xf32>
    %c0_6 = arith.constant 0 : index
    %c0_7 = arith.constant 0 : index
    %c0_8 = arith.constant 0 : index
    %22 = vector.load %arg3[%c0_6, %c0_7, %c0_8] : memref<1x1x64xf32, #tpu.memory_space<vmem>>, vector<1x1x64xf32>
    %23 = vector.shape_cast %22 : vector<1x1x64xf32> to vector<1x64xf32>
    %24 = vector.broadcast %23 : vector<1x64xf32> to vector<16x64xf32>
    %25 = arith.mulf %21, %24 : vector<16x64xf32>
    %c0_9 = arith.constant 0 : index
    %c0_10 = arith.constant 0 : index
    %c0_11 = arith.constant 0 : index
    %26 = vector.load %arg4[%c0_9, %c0_10, %c0_11] : memref<1x1x64xf32, #tpu.memory_space<vmem>>, vector<1x1x64xf32>
    %27 = vector.shape_cast %26 : vector<1x1x64xf32> to vector<1x64xf32>
    %28 = vector.broadcast %27 : vector<1x64xf32> to vector<16x64xf32>
    %29 = arith.addf %25, %28 : vector<16x64xf32>
    %30 = arith.truncf %29 : vector<16x64xf32> to vector<16x64xbf16>
    %c0_12 = arith.constant 0 : index
    %c0_13 = arith.constant 0 : index
    %c0_14 = arith.constant 0 : index
    %31 = vector.load %arg5[%c0_12, %c0_13, %c0_14] : memref<1x64x64xbf16, #tpu.memory_space<vmem>>, vector<1x64x64xbf16>
    %32 = vector.shape_cast %31 : vector<1x64x64xbf16> to vector<64x64xbf16>
    %cst_15 = arith.constant dense<0.000000e+00> : vector<16x64xf32>
    %33 = tpu.matmul %30, %32, %cst_15 {dimension_numbers = #tpu.dot_dimension_numbers<[1], [0], [0], [1], [0, 0, 1, 1], [], []>} : vector<16x64xbf16>, vector<64x64xbf16>, vector<16x64xf32> -> vector<16x64xf32>
    %c0_16 = arith.constant 0 : index
    %c0_17 = arith.constant 0 : index
    %c0_18 = arith.constant 0 : index
    %34 = vector.load %arg6[%c0_16, %c0_17, %c0_18] : memref<1x1x64xf32, #tpu.memory_space<vmem>>, vector<1x1x64xf32>
    %35 = vector.shape_cast %34 : vector<1x1x64xf32> to vector<1x64xf32>
    %36 = vector.broadcast %35 : vector<1x64xf32> to vector<16x64xf32>
    %37 = arith.addf %33, %36 : vector<16x64xf32>
    %c0_19 = arith.constant 0 : index
    %c0_20 = arith.constant 0 : index
    %c0_21 = arith.constant 0 : index
    %38 = vector.load %arg7[%c0_19, %c0_20, %c0_21] : memref<1x64x64xbf16, #tpu.memory_space<vmem>>, vector<1x64x64xbf16>
    %39 = vector.shape_cast %38 : vector<1x64x64xbf16> to vector<64x64xbf16>
    %cst_22 = arith.constant dense<0.000000e+00> : vector<16x64xf32>
    %40 = tpu.matmul %30, %39, %cst_22 {dimension_numbers = #tpu.dot_dimension_numbers<[1], [0], [0], [1], [0, 0, 1, 1], [], []>} : vector<16x64xbf16>, vector<64x64xbf16>, vector<16x64xf32> -> vector<16x64xf32>
    %c0_23 = arith.constant 0 : index
    %c0_24 = arith.constant 0 : index
    %c0_25 = arith.constant 0 : index
    %41 = vector.load %arg8[%c0_23, %c0_24, %c0_25] : memref<1x1x64xf32, #tpu.memory_space<vmem>>, vector<1x1x64xf32>
    %42 = vector.shape_cast %41 : vector<1x1x64xf32> to vector<1x64xf32>
    %43 = vector.broadcast %42 : vector<1x64xf32> to vector<16x64xf32>
    %44 = arith.addf %40, %43 : vector<16x64xf32>
    %c0_26 = arith.constant 0 : index
    %c0_27 = arith.constant 0 : index
    %c0_28 = arith.constant 0 : index
    %45 = vector.load %arg9[%c0_26, %c0_27, %c0_28] : memref<1x64x64xbf16, #tpu.memory_space<vmem>>, vector<1x64x64xbf16>
    %46 = vector.shape_cast %45 : vector<1x64x64xbf16> to vector<64x64xbf16>
    %cst_29 = arith.constant dense<0.000000e+00> : vector<16x64xf32>
    %47 = tpu.matmul %30, %46, %cst_29 {dimension_numbers = #tpu.dot_dimension_numbers<[1], [0], [0], [1], [0, 0, 1, 1], [], []>} : vector<16x64xbf16>, vector<64x64xbf16>, vector<16x64xf32> -> vector<16x64xf32>
    %c0_30 = arith.constant 0 : index
    %c0_31 = arith.constant 0 : index
    %c0_32 = arith.constant 0 : index
    %48 = vector.load %arg10[%c0_30, %c0_31, %c0_32] : memref<1x1x64xf32, #tpu.memory_space<vmem>>, vector<1x1x64xf32>
    %49 = vector.shape_cast %48 : vector<1x1x64xf32> to vector<1x64xf32>
    %50 = vector.broadcast %49 : vector<1x64xf32> to vector<16x64xf32>
    %51 = arith.addf %47, %50 : vector<16x64xf32>
    %52 = vector.extract_strided_slice %37 {offsets = [0, 0], sizes = [16, 16], strides = [1, 1]} : vector<16x64xf32> to vector<16x16xf32>
    %53 = vector.shape_cast %52 : vector<16x16xf32> to vector<2x8x16xf32>
    %54 = arith.truncf %53 : vector<2x8x16xf32> to vector<2x8x16xbf16>
    %55 = vector.extract_strided_slice %44 {offsets = [0, 0], sizes = [16, 16], strides = [1, 1]} : vector<16x64xf32> to vector<16x16xf32>
    %56 = vector.shape_cast %55 : vector<16x16xf32> to vector<2x8x16xf32>
    %57 = arith.truncf %56 : vector<2x8x16xf32> to vector<2x8x16xbf16>
    %58 = vector.extract_strided_slice %51 {offsets = [0, 0], sizes = [16, 16], strides = [1, 1]} : vector<16x64xf32> to vector<16x16xf32>
    %59 = vector.shape_cast %58 : vector<16x16xf32> to vector<2x8x16xf32>
    %60 = arith.truncf %59 : vector<2x8x16xf32> to vector<2x8x16xbf16>
    "tpu.trace_start"() <{level = 10 : i32, message = "bqd,bkd->bqk"}> : () -> ()
    %cst_33 = arith.constant dense<0.000000e+00> : vector<2x8x8xf32>
    %61 = tpu.matmul %54, %57, %cst_33 {dimension_numbers = #tpu.dot_dimension_numbers<[2], [2], [1], [1], [0, 0, 0, 1, 1, 1], [0], [0]>} : vector<2x8x16xbf16>, vector<2x8x16xbf16>, vector<2x8x8xf32> -> vector<2x8x8xf32>
    "tpu.trace_stop"() : () -> ()
    %cst_34 = arith.constant dense<0xFF800000> : vector<2x8xf32>
    %62 = vector.multi_reduction <maximumf>, %61, %cst_34 [2] : vector<2x8x8xf32> to vector<2x8xf32>
    %63 = vector.shape_cast %62 : vector<2x8xf32> to vector<2x8x1xf32>
    %64 = vector.broadcast %63 : vector<2x8x1xf32> to vector<2x8x8xf32>
    %65 = arith.subf %61, %64 : vector<2x8x8xf32>
    %66 = math.exp %65 : vector<2x8x8xf32>
    %cst_35 = arith.constant dense<0.000000e+00> : vector<2x8xf32>
    %67 = vector.multi_reduction <add>, %66, %cst_35 [2] : vector<2x8x8xf32> to vector<2x8xf32>
    %68 = vector.shape_cast %67 : vector<2x8xf32> to vector<2x8x1xf32>
    %69 = tpu.reciprocal %68 {approx = true} : vector<2x8x1xf32> -> vector<2x8x1xf32>
    %70 = vector.broadcast %69 : vector<2x8x1xf32> to vector<2x8x8xf32>
    %71 = arith.mulf %66, %70 : vector<2x8x8xf32>
    %72 = arith.truncf %71 : vector<2x8x8xf32> to vector<2x8x8xbf16>
    "tpu.trace_start"() <{level = 10 : i32, message = "bqk,bkd->bqd"}> : () -> ()
    %cst_36 = arith.constant dense<0.000000e+00> : vector<2x8x16xf32>
    %73 = tpu.matmul %72, %60, %cst_36 {dimension_numbers = #tpu.dot_dimension_numbers<[2], [1], [1], [2], [0, 0, 0, 1, 1, 2], [0], [0]>} : vector<2x8x8xbf16>, vector<2x8x16xbf16>, vector<2x8x16xf32> -> vector<2x8x16xf32>
    "tpu.trace_stop"() : () -> ()
    %74 = vector.shape_cast %73 : vector<2x8x16xf32> to vector<16x16xf32>
    %c0_37 = arith.constant 0 : index
    %c0_38 = arith.constant 0 : index
    %75 = vector.load %arg21[%c0_37, %c0_38] : memref<16x64xf32, #tpu.memory_space<vmem>>, vector<16x16xf32>
    tpu.vector_store %arg21[%c0_37, %c0_38], %74 {strides = array<i32>} : memref<16x64xf32, #tpu.memory_space<vmem>>, vector<16x16xf32>,
    %76 = vector.extract_strided_slice %37 {offsets = [0, 16], sizes = [16, 16], strides = [1, 1]} : vector<16x64xf32> to vector<16x16xf32>
    %77 = vector.shape_cast %76 : vector<16x16xf32> to vector<2x8x16xf32>
    %78 = arith.truncf %77 : vector<2x8x16xf32> to vector<2x8x16xbf16>
    %79 = vector.extract_strided_slice %44 {offsets = [0, 16], sizes = [16, 16], strides = [1, 1]} : vector<16x64xf32> to vector<16x16xf32>
    %80 = vector.shape_cast %79 : vector<16x16xf32> to vector<2x8x16xf32>
    %81 = arith.truncf %80 : vector<2x8x16xf32> to vector<2x8x16xbf16>
    %82 = vector.extract_strided_slice %51 {offsets = [0, 16], sizes = [16, 16], strides = [1, 1]} : vector<16x64xf32> to vector<16x16xf32>
    %83 = vector.shape_cast %82 : vector<16x16xf32> to vector<2x8x16xf32>
    %84 = arith.truncf %83 : vector<2x8x16xf32> to vector<2x8x16xbf16>
    "tpu.trace_start"() <{level = 10 : i32, message = "bqd,bkd->bqk"}> : () -> ()
    %cst_39 = arith.constant dense<0.000000e+00> : vector<2x8x8xf32>
    %85 = tpu.matmul %78, %81, %cst_39 {dimension_numbers = #tpu.dot_dimension_numbers<[2], [2], [1], [1], [0, 0, 0, 1, 1, 1], [0], [0]>} : vector<2x8x16xbf16>, vector<2x8x16xbf16>, vector<2x8x8xf32> -> vector<2x8x8xf32>
    "tpu.trace_stop"() : () -> ()
    %cst_40 = arith.constant dense<0xFF800000> : vector<2x8xf32>
    %86 = vector.multi_reduction <maximumf>, %85, %cst_40 [2] : vector<2x8x8xf32> to vector<2x8xf32>
    %87 = vector.shape_cast %86 : vector<2x8xf32> to vector<2x8x1xf32>
    %88 = vector.broadcast %87 : vector<2x8x1xf32> to vector<2x8x8xf32>
    %89 = arith.subf %85, %88 : vector<2x8x8xf32>
    %90 = math.exp %89 : vector<2x8x8xf32>
    %cst_41 = arith.constant dense<0.000000e+00> : vector<2x8xf32>
    %91 = vector.multi_reduction <add>, %90, %cst_41 [2] : vector<2x8x8xf32> to vector<2x8xf32>
    %92 = vector.shape_cast %91 : vector<2x8xf32> to vector<2x8x1xf32>
    %93 = tpu.reciprocal %92 {approx = true} : vector<2x8x1xf32> -> vector<2x8x1xf32>
    %94 = vector.broadcast %93 : vector<2x8x1xf32> to vector<2x8x8xf32>
    %95 = arith.mulf %90, %94 : vector<2x8x8xf32>
    %96 = arith.truncf %95 : vector<2x8x8xf32> to vector<2x8x8xbf16>
    "tpu.trace_start"() <{level = 10 : i32, message = "bqk,bkd->bqd"}> : () -> ()
    %cst_42 = arith.constant dense<0.000000e+00> : vector<2x8x16xf32>
    %97 = tpu.matmul %96, %84, %cst_42 {dimension_numbers = #tpu.dot_dimension_numbers<[2], [1], [1], [2], [0, 0, 0, 1, 1, 2], [0], [0]>} : vector<2x8x8xbf16>, vector<2x8x16xbf16>, vector<2x8x16xf32> -> vector<2x8x16xf32>
    "tpu.trace_stop"() : () -> ()
    %98 = vector.shape_cast %97 : vector<2x8x16xf32> to vector<16x16xf32>
    %c0_43 = arith.constant 0 : index
    %c16 = arith.constant 16 : index
    %99 = vector.load %arg21[%c0_43, %c16] : memref<16x64xf32, #tpu.memory_space<vmem>>, vector<16x16xf32>
    tpu.vector_store %arg21[%c0_43, %c16], %98 {strides = array<i32>} : memref<16x64xf32, #tpu.memory_space<vmem>>, vector<16x16xf32>,
    %100 = vector.extract_strided_slice %37 {offsets = [0, 32], sizes = [16, 16], strides = [1, 1]} : vector<16x64xf32> to vector<16x16xf32>
    %101 = vector.shape_cast %100 : vector<16x16xf32> to vector<2x8x16xf32>
    %102 = arith.truncf %101 : vector<2x8x16xf32> to vector<2x8x16xbf16>
    %103 = vector.extract_strided_slice %44 {offsets = [0, 32], sizes = [16, 16], strides = [1, 1]} : vector<16x64xf32> to vector<16x16xf32>
    %104 = vector.shape_cast %103 : vector<16x16xf32> to vector<2x8x16xf32>
    %105 = arith.truncf %104 : vector<2x8x16xf32> to vector<2x8x16xbf16>
    %106 = vector.extract_strided_slice %51 {offsets = [0, 32], sizes = [16, 16], strides = [1, 1]} : vector<16x64xf32> to vector<16x16xf32>
    %107 = vector.shape_cast %106 : vector<16x16xf32> to vector<2x8x16xf32>
    %108 = arith.truncf %107 : vector<2x8x16xf32> to vector<2x8x16xbf16>
    "tpu.trace_start"() <{level = 10 : i32, message = "bqd,bkd->bqk"}> : () -> ()
    %cst_44 = arith.constant dense<0.000000e+00> : vector<2x8x8xf32>
    %109 = tpu.matmul %102, %105, %cst_44 {dimension_numbers = #tpu.dot_dimension_numbers<[2], [2], [1], [1], [0, 0, 0, 1, 1, 1], [0], [0]>} : vector<2x8x16xbf16>, vector<2x8x16xbf16>, vector<2x8x8xf32> -> vector<2x8x8xf32>
    "tpu.trace_stop"() : () -> ()
    %cst_45 = arith.constant dense<0xFF800000> : vector<2x8xf32>
    %110 = vector.multi_reduction <maximumf>, %109, %cst_45 [2] : vector<2x8x8xf32> to vector<2x8xf32>
    %111 = vector.shape_cast %110 : vector<2x8xf32> to vector<2x8x1xf32>
    %112 = vector.broadcast %111 : vector<2x8x1xf32> to vector<2x8x8xf32>
    %113 = arith.subf %109, %112 : vector<2x8x8xf32>
    %114 = math.exp %113 : vector<2x8x8xf32>
    %cst_46 = arith.constant dense<0.000000e+00> : vector<2x8xf32>
    %115 = vector.multi_reduction <add>, %114, %cst_46 [2] : vector<2x8x8xf32> to vector<2x8xf32>
    %116 = vector.shape_cast %115 : vector<2x8xf32> to vector<2x8x1xf32>
    %117 = tpu.reciprocal %116 {approx = true} : vector<2x8x1xf32> -> vector<2x8x1xf32>
    %118 = vector.broadcast %117 : vector<2x8x1xf32> to vector<2x8x8xf32>
    %119 = arith.mulf %114, %118 : vector<2x8x8xf32>
    %120 = arith.truncf %119 : vector<2x8x8xf32> to vector<2x8x8xbf16>
    "tpu.trace_start"() <{level = 10 : i32, message = "bqk,bkd->bqd"}> : () -> ()
    %cst_47 = arith.constant dense<0.000000e+00> : vector<2x8x16xf32>
    %121 = tpu.matmul %120, %108, %cst_47 {dimension_numbers = #tpu.dot_dimension_numbers<[2], [1], [1], [2], [0, 0, 0, 1, 1, 2], [0], [0]>} : vector<2x8x8xbf16>, vector<2x8x16xbf16>, vector<2x8x16xf32> -> vector<2x8x16xf32>
    "tpu.trace_stop"() : () -> ()
    %122 = vector.shape_cast %121 : vector<2x8x16xf32> to vector<16x16xf32>
    %c0_48 = arith.constant 0 : index
    %c32 = arith.constant 32 : index
    %123 = vector.load %arg21[%c0_48, %c32] : memref<16x64xf32, #tpu.memory_space<vmem>>, vector<16x16xf32>
    tpu.vector_store %arg21[%c0_48, %c32], %122 {strides = array<i32>} : memref<16x64xf32, #tpu.memory_space<vmem>>, vector<16x16xf32>,
    %124 = vector.extract_strided_slice %37 {offsets = [0, 48], sizes = [16, 16], strides = [1, 1]} : vector<16x64xf32> to vector<16x16xf32>
    %125 = vector.shape_cast %124 : vector<16x16xf32> to vector<2x8x16xf32>
    %126 = arith.truncf %125 : vector<2x8x16xf32> to vector<2x8x16xbf16>
    %127 = vector.extract_strided_slice %44 {offsets = [0, 48], sizes = [16, 16], strides = [1, 1]} : vector<16x64xf32> to vector<16x16xf32>
    %128 = vector.shape_cast %127 : vector<16x16xf32> to vector<2x8x16xf32>
    %129 = arith.truncf %128 : vector<2x8x16xf32> to vector<2x8x16xbf16>
    %130 = vector.extract_strided_slice %51 {offsets = [0, 48], sizes = [16, 16], strides = [1, 1]} : vector<16x64xf32> to vector<16x16xf32>
    %131 = vector.shape_cast %130 : vector<16x16xf32> to vector<2x8x16xf32>
    %132 = arith.truncf %131 : vector<2x8x16xf32> to vector<2x8x16xbf16>
    "tpu.trace_start"() <{level = 10 : i32, message = "bqd,bkd->bqk"}> : () -> ()
    %cst_49 = arith.constant dense<0.000000e+00> : vector<2x8x8xf32>
    %133 = tpu.matmul %126, %129, %cst_49 {dimension_numbers = #tpu.dot_dimension_numbers<[2], [2], [1], [1], [0, 0, 0, 1, 1, 1], [0], [0]>} : vector<2x8x16xbf16>, vector<2x8x16xbf16>, vector<2x8x8xf32> -> vector<2x8x8xf32>
    "tpu.trace_stop"() : () -> ()
    %cst_50 = arith.constant dense<0xFF800000> : vector<2x8xf32>
    %134 = vector.multi_reduction <maximumf>, %133, %cst_50 [2] : vector<2x8x8xf32> to vector<2x8xf32>
    %135 = vector.shape_cast %134 : vector<2x8xf32> to vector<2x8x1xf32>
    %136 = vector.broadcast %135 : vector<2x8x1xf32> to vector<2x8x8xf32>
    %137 = arith.subf %133, %136 : vector<2x8x8xf32>
    %138 = math.exp %137 : vector<2x8x8xf32>
    %cst_51 = arith.constant dense<0.000000e+00> : vector<2x8xf32>
    %139 = vector.multi_reduction <add>, %138, %cst_51 [2] : vector<2x8x8xf32> to vector<2x8xf32>
    %140 = vector.shape_cast %139 : vector<2x8xf32> to vector<2x8x1xf32>
    %141 = tpu.reciprocal %140 {approx = true} : vector<2x8x1xf32> -> vector<2x8x1xf32>
    %142 = vector.broadcast %141 : vector<2x8x1xf32> to vector<2x8x8xf32>
    %143 = arith.mulf %138, %142 : vector<2x8x8xf32>
    %144 = arith.truncf %143 : vector<2x8x8xf32> to vector<2x8x8xbf16>
    "tpu.trace_start"() <{level = 10 : i32, message = "bqk,bkd->bqd"}> : () -> ()
    %cst_52 = arith.constant dense<0.000000e+00> : vector<2x8x16xf32>
    %145 = tpu.matmul %144, %132, %cst_52 {dimension_numbers = #tpu.dot_dimension_numbers<[2], [1], [1], [2], [0, 0, 0, 1, 1, 2], [0], [0]>} : vector<2x8x8xbf16>, vector<2x8x16xbf16>, vector<2x8x16xf32> -> vector<2x8x16xf32>
    "tpu.trace_stop"() : () -> ()
    %146 = vector.shape_cast %145 : vector<2x8x16xf32> to vector<16x16xf32>
    %c0_53 = arith.constant 0 : index
    %c48 = arith.constant 48 : index
    %147 = vector.load %arg21[%c0_53, %c48] : memref<16x64xf32, #tpu.memory_space<vmem>>, vector<16x16xf32>
    tpu.vector_store %arg21[%c0_53, %c48], %146 {strides = array<i32>} : memref<16x64xf32, #tpu.memory_space<vmem>>, vector<16x16xf32>,
    %c0_54 = arith.constant 0 : index
    %c0_55 = arith.constant 0 : index
    %148 = vector.load %arg21[%c0_54, %c0_55] : memref<16x64xf32, #tpu.memory_space<vmem>>, vector<16x64xf32>
    %149 = arith.truncf %148 : vector<16x64xf32> to vector<16x64xbf16>
    %c0_56 = arith.constant 0 : index
    %c0_57 = arith.constant 0 : index
    %c0_58 = arith.constant 0 : index
    %150 = vector.load %arg11[%c0_56, %c0_57, %c0_58] : memref<1x64x64xbf16, #tpu.memory_space<vmem>>, vector<1x64x64xbf16>
    %151 = vector.shape_cast %150 : vector<1x64x64xbf16> to vector<64x64xbf16>
    %cst_59 = arith.constant dense<0.000000e+00> : vector<16x64xf32>
    %152 = tpu.matmul %149, %151, %cst_59 {dimension_numbers = #tpu.dot_dimension_numbers<[1], [0], [0], [1], [0, 0, 1, 1], [], []>} : vector<16x64xbf16>, vector<64x64xbf16>, vector<16x64xf32> -> vector<16x64xf32>
    %c0_60 = arith.constant 0 : index
    %c0_61 = arith.constant 0 : index
    %c0_62 = arith.constant 0 : index
    %153 = vector.load %arg12[%c0_60, %c0_61, %c0_62] : memref<1x1x64xf32, #tpu.memory_space<vmem>>, vector<1x1x64xf32>
    %154 = vector.shape_cast %153 : vector<1x1x64xf32> to vector<1x64xf32>
    %155 = vector.broadcast %154 : vector<1x64xf32> to vector<16x64xf32>
    %156 = arith.addf %152, %155 : vector<16x64xf32>
    %157 = arith.addf %3, %156 : vector<16x64xf32>
    %cst_63 = arith.constant dense<0.000000e+00> : vector<16xf32>
    %158 = vector.multi_reduction <add>, %157, %cst_63 [1] : vector<16x64xf32> to vector<16xf32>
    %159 = vector.shape_cast %158 : vector<16xf32> to vector<16x1xf32>
    %cst_64 = arith.constant 6.400000e+01 : f32
    %160 = vector.broadcast %cst_64 : f32 to vector<16x1xf32>
    %161 = arith.divf %159, %160 : vector<16x1xf32>
    %162 = vector.broadcast %161 : vector<16x1xf32> to vector<16x64xf32>
    %163 = arith.subf %157, %162 : vector<16x64xf32>
    %164 = arith.mulf %163, %163 : vector<16x64xf32>
    %cst_65 = arith.constant dense<0.000000e+00> : vector<16xf32>
    %165 = vector.multi_reduction <add>, %164, %cst_65 [1] : vector<16x64xf32> to vector<16xf32>
    %166 = vector.shape_cast %165 : vector<16xf32> to vector<16x1xf32>
    %cst_66 = arith.constant 6.400000e+01 : f32
    %167 = vector.broadcast %cst_66 : f32 to vector<16x1xf32>
    %168 = arith.divf %166, %167 : vector<16x1xf32>
    %169 = vector.broadcast %161 : vector<16x1xf32> to vector<16x64xf32>
    %170 = arith.subf %157, %169 : vector<16x64xf32>
    %cst_67 = arith.constant 9.99999974E-6 : f32
    %171 = vector.broadcast %cst_67 : f32 to vector<16x1xf32>
    %172 = arith.addf %168, %171 : vector<16x1xf32>
    %173 = math.rsqrt %172 : vector<16x1xf32>
    %174 = vector.broadcast %173 : vector<16x1xf32> to vector<16x64xf32>
    %175 = arith.mulf %170, %174 : vector<16x64xf32>
    %c0_68 = arith.constant 0 : index
    %c0_69 = arith.constant 0 : index
    %c0_70 = arith.constant 0 : index
    %176 = vector.load %arg13[%c0_68, %c0_69, %c0_70] : memref<1x1x64xf32, #tpu.memory_space<vmem>>, vector<1x1x64xf32>
    %177 = vector.shape_cast %176 : vector<1x1x64xf32> to vector<1x64xf32>
    %178 = vector.broadcast %177 : vector<1x64xf32> to vector<16x64xf32>
    %179 = arith.mulf %175, %178 : vector<16x64xf32>
    %c0_71 = arith.constant 0 : index
    %c0_72 = arith.constant 0 : index
    %c0_73 = arith.constant 0 : index
    %180 = vector.load %arg14[%c0_71, %c0_72, %c0_73] : memref<1x1x64xf32, #tpu.memory_space<vmem>>, vector<1x1x64xf32>
    %181 = vector.shape_cast %180 : vector<1x1x64xf32> to vector<1x64xf32>
    %182 = vector.broadcast %181 : vector<1x64xf32> to vector<16x64xf32>
    %183 = arith.addf %179, %182 : vector<16x64xf32>
    %184 = arith.truncf %183 : vector<16x64xf32> to vector<16x64xbf16>
    %c0_74 = arith.constant 0 : index
    %c0_75 = arith.constant 0 : index
    %c0_76 = arith.constant 0 : index
    %185 = vector.load %arg15[%c0_74, %c0_75, %c0_76] : memref<1x64x256xbf16, #tpu.memory_space<vmem>>, vector<1x64x256xbf16>
    %186 = vector.shape_cast %185 : vector<1x64x256xbf16> to vector<64x256xbf16>
    %cst_77 = arith.constant dense<0.000000e+00> : vector<16x256xf32>
    %187 = tpu.matmul %184, %186, %cst_77 {dimension_numbers = #tpu.dot_dimension_numbers<[1], [0], [0], [1], [0, 0, 1, 1], [], []>} : vector<16x64xbf16>, vector<64x256xbf16>, vector<16x256xf32> -> vector<16x256xf32>
    %c0_78 = arith.constant 0 : index
    %c0_79 = arith.constant 0 : index
    %c0_80 = arith.constant 0 : index
    %188 = vector.load %arg16[%c0_78, %c0_79, %c0_80] : memref<1x1x256xf32, #tpu.memory_space<vmem>>, vector<1x1x256xf32>
    %189 = vector.shape_cast %188 : vector<1x1x256xf32> to vector<1x256xf32>
    %190 = vector.broadcast %189 : vector<1x256xf32> to vector<16x256xf32>
    %191 = arith.addf %187, %190 : vector<16x256xf32>
    %cst_81 = arith.constant 1.702000e+00 : f32
    %192 = vector.broadcast %cst_81 : f32 to vector<16x256xf32>
    %193 = arith.mulf %192, %191 : vector<16x256xf32>
    %194 = arith.negf %193 : vector<16x256xf32>
    %195 = math.exp %194 : vector<16x256xf32>
    %cst_82 = arith.constant 1.000000e+00 : f32
    %196 = vector.broadcast %cst_82 : f32 to vector<16x256xf32>
    %197 = arith.addf %196, %195 : vector<16x256xf32>
    %198 = arith.divf %196, %197 : vector<16x256xf32>
    %199 = arith.mulf %191, %198 : vector<16x256xf32>
    %200 = arith.truncf %199 : vector<16x256xf32> to vector<16x256xbf16>
    %c0_83 = arith.constant 0 : index
    %c0_84 = arith.constant 0 : index
    %c0_85 = arith.constant 0 : index
    %201 = vector.load %arg17[%c0_83, %c0_84, %c0_85] : memref<1x256x64xbf16, #tpu.memory_space<vmem>>, vector<1x256x64xbf16>
    %202 = vector.shape_cast %201 : vector<1x256x64xbf16> to vector<256x64xbf16>
    %cst_86 = arith.constant dense<0.000000e+00> : vector<16x64xf32>
    %203 = tpu.matmul %200, %202, %cst_86 {dimension_numbers = #tpu.dot_dimension_numbers<[1], [0], [0], [1], [0, 0, 1, 1], [], []>} : vector<16x256xbf16>, vector<256x64xbf16>, vector<16x64xf32> -> vector<16x64xf32>
    %c0_87 = arith.constant 0 : index
    %c0_88 = arith.constant 0 : index
    %c0_89 = arith.constant 0 : index
    %204 = vector.load %arg18[%c0_87, %c0_88, %c0_89] : memref<1x1x64xf32, #tpu.memory_space<vmem>>, vector<1x1x64xf32>
    %205 = vector.shape_cast %204 : vector<1x1x64xf32> to vector<1x64xf32>
    %206 = vector.broadcast %205 : vector<1x64xf32> to vector<16x64xf32>
    %207 = arith.addf %203, %206 : vector<16x64xf32>
    %208 = arith.addf %157, %207 : vector<16x64xf32>
    %c0_90 = arith.constant 0 : index
    %c0_91 = arith.constant 0 : index
    %209 = vector.load %arg20[%c0_90, %c0_91] : memref<16x64xf32, #tpu.memory_space<vmem>>, vector<16x64xf32>
    tpu.vector_store %arg20[%c0_90, %c0_91], %208 {strides = array<i32>} : memref<16x64xf32, #tpu.memory_space<vmem>>, vector<16x64xf32>,
    %c1_i32 = arith.constant 1 : i32
    %210 = arith.cmpi eq, %arg1, %c1_i32 : i32
    %211 = arith.extui %210 : i1 to i32
    %c0_i32_92 = arith.constant 0 : i32
    %212 = arith.cmpi ne, %211, %c0_i32_92 : i32
    scf.if %212 {
      %c0_93 = arith.constant 0 : index
      %c0_94 = arith.constant 0 : index
      %213 = vector.load %arg19[%c0_93, %c0_94] : memref<16x64xf32, #tpu.memory_space<vmem>>, vector<16x64xf32>
      tpu.vector_store %arg19[%c0_93, %c0_94], %208 {strides = array<i32>} : memref<16x64xf32, #tpu.memory_space<vmem>>, vector<16x64xf32>,
    } else {
    }
    return
  }
  func.func @transform_0(%arg0: i32, %arg1: i32) -> (i32, i32) {
    %c0_i32 = arith.constant 0 : i32
    %c0_i32_0 = arith.constant 0 : i32
    return %arg0, %c0_i32 : i32, i32
  }
  func.func @transform_1(%arg0: i32, %arg1: i32) -> (i32, i32, i32) {
    %c0_i32 = arith.constant 0 : i32
    %c0_i32_0 = arith.constant 0 : i32
    %c0_i32_1 = arith.constant 0 : i32
    return %arg1, %c0_i32, %c0_i32_0 : i32, i32, i32
  }
  func.func @transform_2(%arg0: i32, %arg1: i32) -> (i32, i32, i32) {
    %c0_i32 = arith.constant 0 : i32
    %c0_i32_0 = arith.constant 0 : i32
    %c0_i32_1 = arith.constant 0 : i32
    return %arg1, %c0_i32, %c0_i32_0 : i32, i32, i32
  }
  func.func @transform_3(%arg0: i32, %arg1: i32) -> (i32, i32, i32) {
    %c0_i32 = arith.constant 0 : i32
    %c0_i32_0 = arith.constant 0 : i32
    %c0_i32_1 = arith.constant 0 : i32
    return %arg1, %c0_i32, %c0_i32_0 : i32, i32, i32
  }
  func.func @transform_4(%arg0: i32, %arg1: i32) -> (i32, i32, i32) {
    %c0_i32 = arith.constant 0 : i32
    %c0_i32_0 = arith.constant 0 : i32
    %c0_i32_1 = arith.constant 0 : i32
    return %arg1, %c0_i32, %c0_i32_0 : i32, i32, i32
  }
  func.func @transform_5(%arg0: i32, %arg1: i32) -> (i32, i32, i32) {
    %c0_i32 = arith.constant 0 : i32
    %c0_i32_0 = arith.constant 0 : i32
    %c0_i32_1 = arith.constant 0 : i32
    return %arg1, %c0_i32, %c0_i32_0 : i32, i32, i32
  }
  func.func @transform_6(%arg0: i32, %arg1: i32) -> (i32, i32, i32) {
    %c0_i32 = arith.constant 0 : i32
    %c0_i32_0 = arith.constant 0 : i32
    %c0_i32_1 = arith.constant 0 : i32
    return %arg1, %c0_i32, %c0_i32_0 : i32, i32, i32
  }
  func.func @transform_7(%arg0: i32, %arg1: i32) -> (i32, i32, i32) {
    %c0_i32 = arith.constant 0 : i32
    %c0_i32_0 = arith.constant 0 : i32
    %c0_i32_1 = arith.constant 0 : i32
    return %arg1, %c0_i32, %c0_i32_0 : i32, i32, i32
  }
  func.func @transform_8(%arg0: i32, %arg1: i32) -> (i32, i32, i32) {
    %c0_i32 = arith.constant 0 : i32
    %c0_i32_0 = arith.constant 0 : i32
    %c0_i32_1 = arith.constant 0 : i32
    return %arg1, %c0_i32, %c0_i32_0 : i32, i32, i32
  }
  func.func @transform_9(%arg0: i32, %arg1: i32) -> (i32, i32, i32) {
    %c0_i32 = arith.constant 0 : i32
    %c0_i32_0 = arith.constant 0 : i32
    %c0_i32_1 = arith.constant 0 : i32
    return %arg1, %c0_i32, %c0_i32_0 : i32, i32, i32
  }
  func.func @transform_10(%arg0: i32, %arg1: i32) -> (i32, i32, i32) {
    %c0_i32 = arith.constant 0 : i32
    %c0_i32_0 = arith.constant 0 : i32
    %c0_i32_1 = arith.constant 0 : i32
    return %arg1, %c0_i32, %c0_i32_0 : i32, i32, i32
  }
  func.func @transform_11(%arg0: i32, %arg1: i32) -> (i32, i32, i32) {
    %c0_i32 = arith.constant 0 : i32
    %c0_i32_0 = arith.constant 0 : i32
    %c0_i32_1 = arith.constant 0 : i32
    return %arg1, %c0_i32, %c0_i32_0 : i32, i32, i32
  }
  func.func @transform_12(%arg0: i32, %arg1: i32) -> (i32, i32, i32) {
    %c0_i32 = arith.constant 0 : i32
    %c0_i32_0 = arith.constant 0 : i32
    %c0_i32_1 = arith.constant 0 : i32
    return %arg1, %c0_i32, %c0_i32_0 : i32, i32, i32
  }
  func.func @transform_13(%arg0: i32, %arg1: i32) -> (i32, i32, i32) {
    %c0_i32 = arith.constant 0 : i32
    %c0_i32_0 = arith.constant 0 : i32
    %c0_i32_1 = arith.constant 0 : i32
    return %arg1, %c0_i32, %c0_i32_0 : i32, i32, i32
  }
  func.func @transform_14(%arg0: i32, %arg1: i32) -> (i32, i32, i32) {
    %c0_i32 = arith.constant 0 : i32
    %c0_i32_0 = arith.constant 0 : i32
    %c0_i32_1 = arith.constant 0 : i32
    return %arg1, %c0_i32, %c0_i32_0 : i32, i32, i32
  }
  func.func @transform_15(%arg0: i32, %arg1: i32) -> (i32, i32, i32) {
    %c0_i32 = arith.constant 0 : i32
    %c0_i32_0 = arith.constant 0 : i32
    %c0_i32_1 = arith.constant 0 : i32
    return %arg1, %c0_i32, %c0_i32_0 : i32, i32, i32
  }
  func.func @transform_16(%arg0: i32, %arg1: i32) -> (i32, i32, i32) {
    %c0_i32 = arith.constant 0 : i32
    %c0_i32_0 = arith.constant 0 : i32
    %c0_i32_1 = arith.constant 0 : i32
    return %arg1, %c0_i32, %c0_i32_0 : i32, i32, i32
  }
  func.func @transform_17(%arg0: i32, %arg1: i32) -> (i32, i32) {
    %c0_i32 = arith.constant 0 : i32
    %c0_i32_0 = arith.constant 0 : i32
    return %arg0, %c0_i32 : i32, i32
  }
}

</mosaic_0001>

<llo_original>
// kernel: tpu_custom_call.1
$region0: #{tpu_custom_call.1}
  #allocation0 [shape = 'u32[]', space=smem, size = 0x4, offset = 0x4, fixed_abs, tag = 'smem constant byte address 0x4 - core index']
  #allocation1 [shape = 'u32[72,128]{1,0:T(1,128)}', space=vmem, size = 0x9000, scoped, tag = 'internal scratch']
  #allocation2 [shape = 'f32[16,64]{1,0:T(8,128)}', space=vmem, size = 0x2000, scoped, tag = 'scratch operand']
  #allocation3 [shape = 'f32[16,64]{1,0:T(8,128)}', space=vmem, size = 0x2000, scoped, tag = 'scratch operand']
  %s0 = inlined_call_operand.hbm [shape: f32[32,64], index: 0, kind: input, shape index: {}]
  %s1 = inlined_call_operand.hbm [shape: f32[2,1,64], index: 1, kind: input, shape index: {}]
  %s2 = inlined_call_operand.hbm [shape: f32[2,1,64], index: 2, kind: input, shape index: {}]
  %s3 = inlined_call_operand.vmem [shape: bf16[2,64,64], index: 3, kind: input, shape index: {}]
  %s4 = inlined_call_operand.hbm [shape: f32[2,1,64], index: 4, kind: input, shape index: {}]
  %s5 = inlined_call_operand.vmem [shape: bf16[2,64,64], index: 5, kind: input, shape index: {}]
  %s6 = inlined_call_operand.hbm [shape: f32[2,1,64], index: 6, kind: input, shape index: {}]
  %s7 = inlined_call_operand.vmem [shape: bf16[2,64,64], index: 7, kind: input, shape index: {}]
  %s8 = inlined_call_operand.hbm [shape: f32[2,1,64], index: 8, kind: input, shape index: {}]
  %s9 = inlined_call_operand.vmem [shape: bf16[2,64,64], index: 9, kind: input, shape index: {}]
  %s10 = inlined_call_operand.vmem [shape: f32[2,1,64], index: 10, kind: input, shape index: {}]
  %s11 = inlined_call_operand.vmem [shape: f32[2,1,64], index: 11, kind: input, shape index: {}]
  %s12 = inlined_call_operand.hbm [shape: f32[2,1,64], index: 12, kind: input, shape index: {}]
  %s13 = inlined_call_operand.vmem [shape: bf16[2,64,256], index: 13, kind: input, shape index: {}]
  %s14 = inlined_call_operand.vmem [shape: f32[2,1,256], index: 14, kind: input, shape index: {}]
  %s15 = inlined_call_operand.vmem [shape: bf16[2,256,64], index: 15, kind: input, shape index: {}]
  %s16 = inlined_call_operand.vmem [shape: f32[2,1,64], index: 16, kind: input, shape index: {}]
  %s17 = inlined_call_operand.hbm [shape: f32[32,64], index: 17, kind: output, shape index: {}]
  %s18 = sld [smem:[#allocation0]]
  $region137: #{tpu_custom_call.1} parent=0
    _
  %s20 = ssub.s32 1, %s18
  %s21 = scalar_select 0, %s20, %s18
  $region1: #{tpu_custom_call.1} parent=0
    #allocation4 [shape = 'u8[16384]{0}', space=vmem, size = 0x4000, scoped, tag = 'input window, operand 0']
    #allocation5 [shape = 's32[2]{0}', space=sflag, size = 0x8, scoped, tag = 'scoped memory for tpu_custom_call.1']
    #allocation6 [shape = 's32[2]{0}', space=sflag, size = 0x8, scoped, tag = 'scoped memory for tpu_custom_call.1']
    #allocation7 [shape = 'u8[1024]{0}', space=vmem, size = 0x400, scoped, tag = 'input window, operand 1']
    #allocation8 [shape = 's32[2]{0}', space=sflag, size = 0x8, scoped, tag = 'scoped memory for tpu_custom_call.1']
    #allocation9 [shape = 'u8[1024]{0}', space=vmem, size = 0x400, scoped, tag = 'input window, operand 2']
    #allocation10 [shape = 'u8[1024]{0}', space=vmem, size = 0x400, scoped, tag = 'input window, operand 4']
    #allocation11 [shape = 's32[2]{0}', space=sflag, size = 0x8, scoped, tag = 'scoped memory for tpu_custom_call.1']
    #allocation12 [shape = 'u8[1024]{0}', space=vmem, size = 0x400, scoped, tag = 'input window, operand 6']
    #allocation13 [shape = 'u8[1024]{0}', space=vmem, size = 0x400, scoped, tag = 'input window, operand 8']
    #allocation14 [shape = 's32[2]{0}', space=sflag, size = 0x8, scoped, tag = 'scoped memory for tpu_custom_call.1']
    #allocation15 [shape = 'u8[1024]{0}', space=vmem, size = 0x400, scoped, tag = 'input window, operand 12']
    #allocation16 [shape = 'u8[16384]{0}', space=vmem, size = 0x4000, scoped, tag = 'output window, operand 0']
    %22 = vsyncpa [#allocation5], 0
    %s23 = scalar_lea.sflag [#allocation5], 1
    %24 = vsyncpa %s23, 0
    %25 = vsyncpa [#allocation8], 0
    %s26 = scalar_lea.sflag [#allocation8], 1
    %27 = vsyncpa %s26, 0
    %28 = vsyncpa [#allocation11], 0
    %s29 = scalar_lea.sflag [#allocation11], 1
    %30 = vsyncpa %s29, 0
    %31 = vsyncpa [#allocation14], 0
    %s32 = scalar_lea.sflag [#allocation14], 1
    %33 = vsyncpa %s32, 0
    %34 = vsyncpa [#allocation6], 0
    %s35 = scalar_lea.sflag [#allocation6], 1
    %36 = vsyncpa %s35, 0
    loop: start=0, step=1, limit=6
    $region2: #{tpu_custom_call.1} parent=1 // loop_pre_header
      _
    $region3: #{tpu_custom_call.1} parent=1 // loop_header
      %s38 = sphi 0, %s42
      %p39 = scmp.ge.s32.totalorder %s38, 6
      %s45 = sphi 0, %s57
      %s46 = sphi 0, %s53
      %s47 = sphi 0, %s45
      %s48 = sphi 0, %s46
      %s49 = sphi 0, %s47
      %s50 = sphi 0, %s48
      %s60 = sphi 0, %s62
      %s63 = sphi 0, %s60
      %s64 = sphi 0, %s63
      %s80 = sphi 0, %s64
      %s86 = sphi 0, %s88
      %s89 = sphi 0, %s86
      %s90 = sphi 0, %s89
      %s106 = sphi 0, %s90
      %s112 = sphi 0, %s114
      %s115 = sphi 0, %s112
      %s116 = sphi 0, %s115
      %s132 = sphi 0, %s116
      %s138 = sphi 0, %s140
      %s141 = sphi 0, %s138
      %s142 = sphi 0, %s141
      %s158 = sphi 0, %s142
      %s164 = sphi 0, %s166
      %s167 = sphi 0, %s164
      %s168 = sphi 0, %s167
      %s184 = sphi 0, %s168
      %s190 = sphi 0, %s192
      %s193 = sphi 0, %s190
      %s194 = sphi 0, %s193
      %s210 = sphi 0, %s194
      %s216 = sphi 0, %s218
      %s219 = sphi 0, %s216
      %s220 = sphi 0, %s219
      %s236 = sphi 0, %s220
      %s242 = sphi 0, %s244
      %s245 = sphi 0, %s242
      %s246 = sphi 0, %s245
      %s262 = sphi 0, %s246
      %s268 = sphi 0, %s270
      %s271 = sphi 0, %s268
      %s272 = sphi 0, %s271
      %s288 = sphi 0, %s272
      %s294 = sphi 0, %s296
      %s297 = sphi 0, %s294
      %s298 = sphi 0, %s297
      %s314 = sphi 0, %s298
      %s320 = sphi 0, %s322
      %s323 = sphi 0, %s320
      %s324 = sphi 0, %s323
      %s340 = sphi 0, %s324
      %s346 = sphi 0, %s348
      %s349 = sphi 0, %s346
      %s350 = sphi 0, %s349
      %s366 = sphi 0, %s350
      %s372 = sphi 0, %s374
      %s375 = sphi 0, %s372
      %s376 = sphi 0, %s375
      %s392 = sphi 0, %s376
      %s398 = sphi 0, %s400
      %s401 = sphi 0, %s398
      %s402 = sphi 0, %s401
      %s418 = sphi 0, %s402
      %s424 = sphi 0, %s426
      %s427 = sphi 0, %s424
      %s428 = sphi 0, %s427
      %s444 = sphi 0, %s428
      %s450 = sphi 0, %s452
      %s453 = sphi 0, %s450
      %s454 = sphi 0, %s453
      %s470 = sphi 0, %s454
      %s476 = sphi 0, %s478
      %s479 = sphi 0, %s476
      %s480 = sphi 0, %s479
      %s496 = sphi 0, %s480
      %s502 = sphi 0, %s504
      %s505 = sphi 0, %s502
      %s506 = sphi 0, %s505
      %s522 = sphi 0, %s506
    $region4: #{tpu_custom_call.1} parent=1 // loop_header_branch
      %41 = sbr.rel (%p39) target = $region8
    $region5: #{tpu_custom_call.1} parent=1 // loop_body
      %s43 = ssub.s32 %s38, 1
      %s44 = ssub.s32 %s38, 2
      %s51 = sadd.s32 1, %s46
      %p52 = scmp.ge.s32.totalorder %s51, 2
      %s53 = scalar_select %p52, 0, %s51
      %s54 = sadd.s32 1, %s45
      %s55 = scalar_select %p52, %s54, %s45
      %p56 = scmp.ge.s32.totalorder %s55, 2
      %s57 = scalar_select %p56, 0, %s55
      %s58 = ssub.s32 %s45, %s57
      %p59 = scmp.eq.s32.totalorder %s58, 0
      %s61 = sadd.s32 %s60, 1
      %s62 = scalar_select %p59, %s60, %s61
      %p65 = pneg %p59
      %p66 = scmp.eq.s32.totalorder %s38, 3
      %p67 = por %p65, %p66
      %p68 = scmp.ne.s32.totalorder %s60, %s63
      %p69 = scmp.eq.s32.totalorder %s38, 0
      %p70 = por %p68, %p69
      %p71 = scmp.ne.s32.totalorder %s60, %s63
      %p72 = scmp.eq.s32.totalorder %s43, 3
      %p73 = por %p71, %p72
      %p74 = scmp.ne.s32.totalorder %s63, %s64
      %p75 = scmp.eq.s32.totalorder %s43, 0
      %p76 = por %p74, %p75
      %p77 = scmp.ne.s32.totalorder %s63, %s64
      %p78 = scmp.eq.s32.totalorder %s44, 3
      %p79 = por %p77, %p78
      %p81 = scmp.ne.s32.totalorder %s64, %s80
      %p82 = scmp.eq.s32.totalorder %s44, 0
      %p83 = por %p81, %p82
      %s84 = ssub.s32 %s46, %s53
      %p85 = scmp.eq.s32.totalorder %s84, 0
      %s87 = sadd.s32 %s86, 1
      %s88 = scalar_select %p85, %s86, %s87
      %p91 = pneg %p85
      %p92 = scmp.eq.s32.totalorder %s38, 3
      %p93 = por %p91, %p92
      %p94 = scmp.ne.s32.totalorder %s86, %s89
      %p95 = scmp.eq.s32.totalorder %s38, 0
      %p96 = por %p94, %p95
      %p97 = scmp.ne.s32.totalorder %s86, %s89
      %p98 = scmp.eq.s32.totalorder %s43, 3
      %p99 = por %p97, %p98
      %p100 = scmp.ne.s32.totalorder %s89, %s90
      %p101 = scmp.eq.s32.totalorder %s43, 0
      %p102 = por %p100, %p101
      %p103 = scmp.ne.s32.totalorder %s89, %s90
      %p104 = scmp.eq.s32.totalorder %s44, 3
      %p105 = por %p103, %p104
      %p107 = scmp.ne.s32.totalorder %s90, %s106
      %p108 = scmp.eq.s32.totalorder %s44, 0
      %p109 = por %p107, %p108
      %s110 = ssub.s32 %s46, %s53
      %p111 = scmp.eq.s32.totalorder %s110, 0
      %s113 = sadd.s32 %s112, 1
      %s114 = scalar_select %p111, %s112, %s113
      %p117 = pneg %p111
      %p118 = scmp.eq.s32.totalorder %s38, 3
      %p119 = por %p117, %p118
      %p120 = scmp.ne.s32.totalorder %s112, %s115
      %p121 = scmp.eq.s32.totalorder %s38, 0
      %p122 = por %p120, %p121
      %p123 = scmp.ne.s32.totalorder %s112, %s115
      %p124 = scmp.eq.s32.totalorder %s43, 3
      %p125 = por %p123, %p124
      %p126 = scmp.ne.s32.totalorder %s115, %s116
      %p127 = scmp.eq.s32.totalorder %s43, 0
      %p128 = por %p126, %p127
      %p129 = scmp.ne.s32.totalorder %s115, %s116
      %p130 = scmp.eq.s32.totalorder %s44, 3
      %p131 = por %p129, %p130
      %p133 = scmp.ne.s32.totalorder %s116, %s132
      %p134 = scmp.eq.s32.totalorder %s44, 0
      %p135 = por %p133, %p134
      %s136 = ssub.s32 %s46, %s53
      %p137 = scmp.eq.s32.totalorder %s136, 0
      %s139 = sadd.s32 %s138, 1
      %s140 = scalar_select %p137, %s138, %s139
      %p143 = pneg %p137
      %p144 = scmp.eq.s32.totalorder %s38, 3
      %p145 = por %p143, %p144
      %p146 = scmp.ne.s32.totalorder %s138, %s141
      %p147 = scmp.eq.s32.totalorder %s38, 0
      %p148 = por %p146, %p147
      %p149 = scmp.ne.s32.totalorder %s138, %s141
      %p150 = scmp.eq.s32.totalorder %s43, 3
      %p151 = por %p149, %p150
      %p152 = scmp.ne.s32.totalorder %s141, %s142
      %p153 = scmp.eq.s32.totalorder %s43, 0
      %p154 = por %p152, %p153
      %p155 = scmp.ne.s32.totalorder %s141, %s142
      %p156 = scmp.eq.s32.totalorder %s44, 3
      %p157 = por %p155, %p156
      %p159 = scmp.ne.s32.totalorder %s142, %s158
      %p160 = scmp.eq.s32.totalorder %s44, 0
      %p161 = por %p159, %p160
      %s162 = ssub.s32 %s46, %s53
      %p163 = scmp.eq.s32.totalorder %s162, 0
      %s165 = sadd.s32 %s164, 1
      %s166 = scalar_select %p163, %s164, %s165
      %p169 = pneg %p163
      %p170 = scmp.eq.s32.totalorder %s38, 3
      %p171 = por %p169, %p170
      %p172 = scmp.ne.s32.totalorder %s164, %s167
      %p173 = scmp.eq.s32.totalorder %s38, 0
      %p174 = por %p172, %p173
      %p175 = scmp.ne.s32.totalorder %s164, %s167
      %p176 = scmp.eq.s32.totalorder %s43, 3
      %p177 = por %p175, %p176
      %p178 = scmp.ne.s32.totalorder %s167, %s168
      %p179 = scmp.eq.s32.totalorder %s43, 0
      %p180 = por %p178, %p179
      %p181 = scmp.ne.s32.totalorder %s167, %s168
      %p182 = scmp.eq.s32.totalorder %s44, 3
      %p183 = por %p181, %p182
      %p185 = scmp.ne.s32.totalorder %s168, %s184
      %p186 = scmp.eq.s32.totalorder %s44, 0
      %p187 = por %p185, %p186
      %s188 = ssub.s32 %s46, %s53
      %p189 = scmp.eq.s32.totalorder %s188, 0
      %s191 = sadd.s32 %s190, 1
      %s192 = scalar_select %p189, %s190, %s191
      %p195 = pneg %p189
      %p196 = scmp.eq.s32.totalorder %s38, 3
      %p197 = por %p195, %p196
      %p198 = scmp.ne.s32.totalorder %s190, %s193
      %p199 = scmp.eq.s32.totalorder %s38, 0
      %p200 = por %p198, %p199
      %p201 = scmp.ne.s32.totalorder %s190, %s193
      %p202 = scmp.eq.s32.totalorder %s43, 3
      %p203 = por %p201, %p202
      %p204 = scmp.ne.s32.totalorder %s193, %s194
      %p205 = scmp.eq.s32.totalorder %s43, 0
      %p206 = por %p204, %p205
      %p207 = scmp.ne.s32.totalorder %s193, %s194
      %p208 = scmp.eq.s32.totalorder %s44, 3
      %p209 = por %p207, %p208
      %p211 = scmp.ne.s32.totalorder %s194, %s210
      %p212 = scmp.eq.s32.totalorder %s44, 0
      %p213 = por %p211, %p212
      %s214 = ssub.s32 %s46, %s53
      %p215 = scmp.eq.s32.totalorder %s214, 0
      %s217 = sadd.s32 %s216, 1
      %s218 = scalar_select %p215, %s216, %s217
      %p221 = pneg %p215
      %p222 = scmp.eq.s32.totalorder %s38, 3
      %p223 = por %p221, %p222
      %p224 = scmp.ne.s32.totalorder %s216, %s219
      %p225 = scmp.eq.s32.totalorder %s38, 0
      %p226 = por %p224, %p225
      %p227 = scmp.ne.s32.totalorder %s216, %s219
      %p228 = scmp.eq.s32.totalorder %s43, 3
      %p229 = por %p227, %p228
      %p230 = scmp.ne.s32.totalorder %s219, %s220
      %p231 = scmp.eq.s32.totalorder %s43, 0
      %p232 = por %p230, %p231
      %p233 = scmp.ne.s32.totalorder %s219, %s220
      %p234 = scmp.eq.s32.totalorder %s44, 3
      %p235 = por %p233, %p234
      %p237 = scmp.ne.s32.totalorder %s220, %s236
      %p238 = scmp.eq.s32.totalorder %s44, 0
      %p239 = por %p237, %p238
      %s240 = ssub.s32 %s46, %s53
      %p241 = scmp.eq.s32.totalorder %s240, 0
      %s243 = sadd.s32 %s242, 1
      %s244 = scalar_select %p241, %s242, %s243
      %p247 = pneg %p241
      %p248 = scmp.eq.s32.totalorder %s38, 3
      %p249 = por %p247, %p248
      %p250 = scmp.ne.s32.totalorder %s242, %s245
      %p251 = scmp.eq.s32.totalorder %s38, 0
      %p252 = por %p250, %p251
      %p253 = scmp.ne.s32.totalorder %s242, %s245
      %p254 = scmp.eq.s32.totalorder %s43, 3
      %p255 = por %p253, %p254
      %p256 = scmp.ne.s32.totalorder %s245, %s246
      %p257 = scmp.eq.s32.totalorder %s43, 0
      %p258 = por %p256, %p257
      %p259 = scmp.ne.s32.totalorder %s245, %s246
      %p260 = scmp.eq.s32.totalorder %s44, 3
      %p261 = por %p259, %p260
      %p263 = scmp.ne.s32.totalorder %s246, %s262
      %p264 = scmp.eq.s32.totalorder %s44, 0
      %p265 = por %p263, %p264
      %s266 = ssub.s32 %s46, %s53
      %p267 = scmp.eq.s32.totalorder %s266, 0
      %s269 = sadd.s32 %s268, 1
      %s270 = scalar_select %p267, %s268, %s269
      %p273 = pneg %p267
      %p274 = scmp.eq.s32.totalorder %s38, 3
      %p275 = por %p273, %p274
      %p276 = scmp.ne.s32.totalorder %s268, %s271
      %p277 = scmp.eq.s32.totalorder %s38, 0
      %p278 = por %p276, %p277
      %p279 = scmp.ne.s32.totalorder %s268, %s271
      %p280 = scmp.eq.s32.totalorder %s43, 3
      %p281 = por %p279, %p280
      %p282 = scmp.ne.s32.totalorder %s271, %s272
      %p283 = scmp.eq.s32.totalorder %s43, 0
      %p284 = por %p282, %p283
      %p285 = scmp.ne.s32.totalorder %s271, %s272
      %p286 = scmp.eq.s32.totalorder %s44, 3
      %p287 = por %p285, %p286
      %p289 = scmp.ne.s32.totalorder %s272, %s288
      %p290 = scmp.eq.s32.totalorder %s44, 0
      %p291 = por %p289, %p290
      %s292 = ssub.s32 %s46, %s53
      %p293 = scmp.eq.s32.totalorder %s292, 0
      %s295 = sadd.s32 %s294, 1
      %s296 = scalar_select %p293, %s294, %s295
      %p299 = pneg %p293
      %p300 = scmp.eq.s32.totalorder %s38, 3
      %p301 = por %p299, %p300
      %p302 = scmp.ne.s32.totalorder %s294, %s297
      %p303 = scmp.eq.s32.totalorder %s38, 0
      %p304 = por %p302, %p303
      %p305 = scmp.ne.s32.totalorder %s294, %s297
      %p306 = scmp.eq.s32.totalorder %s43, 3
      %p307 = por %p305, %p306
      %p308 = scmp.ne.s32.totalorder %s297, %s298
      %p309 = scmp.eq.s32.totalorder %s43, 0
      %p310 = por %p308, %p309
      %p311 = scmp.ne.s32.totalorder %s297, %s298
      %p312 = scmp.eq.s32.totalorder %s44, 3
      %p313 = por %p311, %p312
      %p315 = scmp.ne.s32.totalorder %s298, %s314
      %p316 = scmp.eq.s32.totalorder %s44, 0
      %p317 = por %p315, %p316
      %s318 = ssub.s32 %s46, %s53
      %p319 = scmp.eq.s32.totalorder %s318, 0
      %s321 = sadd.s32 %s320, 1
      %s322 = scalar_select %p319, %s320, %s321
      %p325 = pneg %p319
      %p326 = scmp.eq.s32.totalorder %s38, 3
      %p327 = por %p325, %p326
      %p328 = scmp.ne.s32.totalorder %s320, %s323
      %p329 = scmp.eq.s32.totalorder %s38, 0
      %p330 = por %p328, %p329
      %p331 = scmp.ne.s32.totalorder %s320, %s323
      %p332 = scmp.eq.s32.totalorder %s43, 3
      %p333 = por %p331, %p332
      %p334 = scmp.ne.s32.totalorder %s323, %s324
      %p335 = scmp.eq.s32.totalorder %s43, 0
      %p336 = por %p334, %p335
      %p337 = scmp.ne.s32.totalorder %s323, %s324
      %p338 = scmp.eq.s32.totalorder %s44, 3
      %p339 = por %p337, %p338
      %p341 = scmp.ne.s32.totalorder %s324, %s340
      %p342 = scmp.eq.s32.totalorder %s44, 0
      %p343 = por %p341, %p342
      %s344 = ssub.s32 %s46, %s53
      %p345 = scmp.eq.s32.totalorder %s344, 0
      %s347 = sadd.s32 %s346, 1
      %s348 = scalar_select %p345, %s346, %s347
      %p351 = pneg %p345
      %p352 = scmp.eq.s32.totalorder %s38, 3
      %p353 = por %p351, %p352
      %p354 = scmp.ne.s32.totalorder %s346, %s349
      %p355 = scmp.eq.s32.totalorder %s38, 0
      %p356 = por %p354, %p355
      %p357 = scmp.ne.s32.totalorder %s346, %s349
      %p358 = scmp.eq.s32.totalorder %s43, 3
      %p359 = por %p357, %p358
      %p360 = scmp.ne.s32.totalorder %s349, %s350
      %p361 = scmp.eq.s32.totalorder %s43, 0
      %p362 = por %p360, %p361
      %p363 = scmp.ne.s32.totalorder %s349, %s350
      %p364 = scmp.eq.s32.totalorder %s44, 3
      %p365 = por %p363, %p364
      %p367 = scmp.ne.s32.totalorder %s350, %s366
      %p368 = scmp.eq.s32.totalorder %s44, 0
      %p369 = por %p367, %p368
      %s370 = ssub.s32 %s46, %s53
      %p371 = scmp.eq.s32.totalorder %s370, 0
      %s373 = sadd.s32 %s372, 1
      %s374 = scalar_select %p371, %s372, %s373
      %p377 = pneg %p371
      %p378 = scmp.eq.s32.totalorder %s38, 3
      %p379 = por %p377, %p378
      %p380 = scmp.ne.s32.totalorder %s372, %s375
      %p381 = scmp.eq.s32.totalorder %s38, 0
      %p382 = por %p380, %p381
      %p383 = scmp.ne.s32.totalorder %s372, %s375
      %p384 = scmp.eq.s32.totalorder %s43, 3
      %p385 = por %p383, %p384
      %p386 = scmp.ne.s32.totalorder %s375, %s376
      %p387 = scmp.eq.s32.totalorder %s43, 0
      %p388 = por %p386, %p387
      %p389 = scmp.ne.s32.totalorder %s375, %s376
      %p390 = scmp.eq.s32.totalorder %s44, 3
      %p391 = por %p389, %p390
      %p393 = scmp.ne.s32.totalorder %s376, %s392
      %p394 = scmp.eq.s32.totalorder %s44, 0
      %p395 = por %p393, %p394
      %s396 = ssub.s32 %s46, %s53
      %p397 = scmp.eq.s32.totalorder %s396, 0
      %s399 = sadd.s32 %s398, 1
      %s400 = scalar_select %p397, %s398, %s399
      %p403 = pneg %p397
      %p404 = scmp.eq.s32.totalorder %s38, 3
      %p405 = por %p403, %p404
      %p406 = scmp.ne.s32.totalorder %s398, %s401
      %p407 = scmp.eq.s32.totalorder %s38, 0
      %p408 = por %p406, %p407
      %p409 = scmp.ne.s32.totalorder %s398, %s401
      %p410 = scmp.eq.s32.totalorder %s43, 3
      %p411 = por %p409, %p410
      %p412 = scmp.ne.s32.totalorder %s401, %s402
      %p413 = scmp.eq.s32.totalorder %s43, 0
      %p414 = por %p412, %p413
      %p415 = scmp.ne.s32.totalorder %s401, %s402
      %p416 = scmp.eq.s32.totalorder %s44, 3
      %p417 = por %p415, %p416
      %p419 = scmp.ne.s32.totalorder %s402, %s418
      %p420 = scmp.eq.s32.totalorder %s44, 0
      %p421 = por %p419, %p420
      %s422 = ssub.s32 %s46, %s53
      %p423 = scmp.eq.s32.totalorder %s422, 0
      %s425 = sadd.s32 %s424, 1
      %s426 = scalar_select %p423, %s424, %s425
      %p429 = pneg %p423
      %p430 = scmp.eq.s32.totalorder %s38, 3
      %p431 = por %p429, %p430
      %p432 = scmp.ne.s32.totalorder %s424, %s427
      %p433 = scmp.eq.s32.totalorder %s38, 0
      %p434 = por %p432, %p433
      %p435 = scmp.ne.s32.totalorder %s424, %s427
      %p436 = scmp.eq.s32.totalorder %s43, 3
      %p437 = por %p435, %p436
      %p438 = scmp.ne.s32.totalorder %s427, %s428
      %p439 = scmp.eq.s32.totalorder %s43, 0
      %p440 = por %p438, %p439
      %p441 = scmp.ne.s32.totalorder %s427, %s428
      %p442 = scmp.eq.s32.totalorder %s44, 3
      %p443 = por %p441, %p442
      %p445 = scmp.ne.s32.totalorder %s428, %s444
      %p446 = scmp.eq.s32.totalorder %s44, 0
      %p447 = por %p445, %p446
      %s448 = ssub.s32 %s46, %s53
      %p449 = scmp.eq.s32.totalorder %s448, 0
      %s451 = sadd.s32 %s450, 1
      %s452 = scalar_select %p449, %s450, %s451
      %p455 = pneg %p449
      %p456 = scmp.eq.s32.totalorder %s38, 3
      %p457 = por %p455, %p456
      %p458 = scmp.ne.s32.totalorder %s450, %s453
      %p459 = scmp.eq.s32.totalorder %s38, 0
      %p460 = por %p458, %p459
      %p461 = scmp.ne.s32.totalorder %s450, %s453
      %p462 = scmp.eq.s32.totalorder %s43, 3
      %p463 = por %p461, %p462
      %p464 = scmp.ne.s32.totalorder %s453, %s454
      %p465 = scmp.eq.s32.totalorder %s43, 0
      %p466 = por %p464, %p465
      %p467 = scmp.ne.s32.totalorder %s453, %s454
      %p468 = scmp.eq.s32.totalorder %s44, 3
      %p469 = por %p467, %p468
      %p471 = scmp.ne.s32.totalorder %s454, %s470
      %p472 = scmp.eq.s32.totalorder %s44, 0
      %p473 = por %p471, %p472
      %s474 = ssub.s32 %s46, %s53
      %p475 = scmp.eq.s32.totalorder %s474, 0
      %s477 = sadd.s32 %s476, 1
      %s478 = scalar_select %p475, %s476, %s477
      %p481 = pneg %p475
      %p482 = scmp.eq.s32.totalorder %s38, 3
      %p483 = por %p481, %p482
      %p484 = scmp.ne.s32.totalorder %s476, %s479
      %p485 = scmp.eq.s32.totalorder %s38, 0
      %p486 = por %p484, %p485
      %p487 = scmp.ne.s32.totalorder %s476, %s479
      %p488 = scmp.eq.s32.totalorder %s43, 3
      %p489 = por %p487, %p488
      %p490 = scmp.ne.s32.totalorder %s479, %s480
      %p491 = scmp.eq.s32.totalorder %s43, 0
      %p492 = por %p490, %p491
      %p493 = scmp.ne.s32.totalorder %s479, %s480
      %p494 = scmp.eq.s32.totalorder %s44, 3
      %p495 = por %p493, %p494
      %p497 = scmp.ne.s32.totalorder %s480, %s496
      %p498 = scmp.eq.s32.totalorder %s44, 0
      %p499 = por %p497, %p498
      %s500 = ssub.s32 %s45, %s57
      %p501 = scmp.eq.s32.totalorder %s500, 0
      %s503 = sadd.s32 %s502, 1
      %s504 = scalar_select %p501, %s502, %s503
      %p507 = pneg %p501
      %p508 = scmp.eq.s32.totalorder %s38, 3
      %p509 = por %p507, %p508
      %p510 = scmp.ne.s32.totalorder %s502, %s505
      %p511 = scmp.eq.s32.totalorder %s38, 0
      %p512 = por %p510, %p511
      %p513 = scmp.ne.s32.totalorder %s502, %s505
      %p514 = scmp.eq.s32.totalorder %s43, 3
      %p515 = por %p513, %p514
      %p516 = scmp.ne.s32.totalorder %s505, %s506
      %p517 = scmp.eq.s32.totalorder %s43, 0
      %p518 = por %p516, %p517
      %p519 = scmp.ne.s32.totalorder %s505, %s506
      %p520 = scmp.eq.s32.totalorder %s44, 3
      %p521 = por %p519, %p520
      %p523 = scmp.ne.s32.totalorder %s506, %s522
      %p524 = scmp.eq.s32.totalorder %s44, 0
      %p525 = por %p523, %p524
      %p526 = scmp.le.s32.totalorder 1, %s38
      %p527 = scmp.lt.s32.totalorder %s38, 5
      %p528 = pnand %p526, %p527
      %p529 = pneg %p528
      // Predicated region
      $region9: #{tpu_custom_call.1} parent=5 // pred_check
        _
      $region10: #{tpu_custom_call.1} parent=5 // pred_check_branch
        %531 = sbr.rel (%p528) target = $region12
      $region11: #{tpu_custom_call.1} parent=5 // pred_region
        %s532 = ssub.s32 %s38, 1
      $region12: #{tpu_custom_call.1} parent=5 // pred_fallthru
        _
      %p533 = scmp.lt.s32.totalorder %s38, 4
      // Predicated region
      $region13: #{tpu_custom_call.1} parent=5 // pred_check
        %p534 = pneg %p533
      $region14: #{tpu_custom_call.1} parent=5 // pred_check_branch
        %536 = sbr.rel (%p534) target = $region16
      $region15: #{tpu_custom_call.1} parent=5 // pred_region
        // Predicated region
        $region17: #{tpu_custom_call.1} parent=15 // pred_check
          %p537 = pneg %p70
        $region18: #{tpu_custom_call.1} parent=15 // pred_check_branch
          %539 = sbr.rel (%p537) target = $region20
        $region19: #{tpu_custom_call.1} parent=15 // pred_region
          %s540 = sand.u32 %s60, 1
          %s541 = scalar_lea.sflag [#allocation5], %s540
          %s542 = sand.u32 %s60, 1
          %s543 = smul.addr %s542, 16
          %s544 = scalar_lea.vmem [#allocation4], %s543
          %s545 = smul.u32 2, %s45
          %547 = vsyncadd %s541, 0
          %s548 = smul.addr %s545, 8
          %s549 = scalar_lea.hbm %s0, %s548
          %s550 = sshll.u32 %s549, 4
          %s551 = int_to_ptr.hbm [resolvable:$true] %s550
          %s552 = sshll.u32 %s544, 4
          %s553 = int_to_ptr.vmem [resolvable:$true] %s552
          %558 = dma.hbm_to_vmem [thread:$0]  %s551, 256, %s553, %s541, 128, 128, 8
        $region20: #{tpu_custom_call.1} parent=15 // pred_fallthru
          _
        // Predicated region
        $region21: #{tpu_custom_call.1} parent=15 // pred_check
          %p559 = pneg %p96
        $region22: #{tpu_custom_call.1} parent=15 // pred_check_branch
          %561 = sbr.rel (%p559) target = $region24
        $region23: #{tpu_custom_call.1} parent=15 // pred_region
          %s562 = sand.u32 %s38, 1
          %s563 = scalar_lea.sflag [#allocation8], %s562
          %s564 = sand.u32 %s86, 1
          %s565 = scalar_lea.vmem [#allocation7], %s564
          %567 = vsyncadd %s563, 0
          %s568 = scalar_lea.hbm %s1, %s46
          %s570 = sshll.u32 %s568, 4
          %s571 = int_to_ptr.hbm [resolvable:$true] %s570
          %s572 = sshll.u32 %s565, 4
          %s573 = int_to_ptr.vmem [resolvable:$true] %s572
          %575 = dma.hbm_to_vmem [thread:$0]  %s571, 16, %s573, %s563
        $region24: #{tpu_custom_call.1} parent=15 // pred_fallthru
          _
        // Predicated region
        $region25: #{tpu_custom_call.1} parent=15 // pred_check
          %p576 = pneg %p122
        $region26: #{tpu_custom_call.1} parent=15 // pred_check_branch
          %578 = sbr.rel (%p576) target = $region28
        $region27: #{tpu_custom_call.1} parent=15 // pred_region
          %s579 = sand.u32 %s38, 1
          %s580 = scalar_lea.sflag [#allocation8], %s579
          %s581 = sand.u32 %s112, 1
          %s582 = scalar_lea.vmem [#allocation9], %s581
          %584 = vsyncadd %s580, 0
          %s585 = scalar_lea.hbm %s2, %s46
          %s587 = sshll.u32 %s585, 4
          %s588 = int_to_ptr.hbm [resolvable:$true] %s587
          %s589 = sshll.u32 %s582, 4
          %s590 = int_to_ptr.vmem [resolvable:$true] %s589
          %592 = dma.hbm_to_vmem [thread:$0]  %s588, 16, %s590, %s580
        $region28: #{tpu_custom_call.1} parent=15 // pred_fallthru
          _
        // Predicated region
        $region29: #{tpu_custom_call.1} parent=15 // pred_check
          %p593 = pneg %p148
        $region30: #{tpu_custom_call.1} parent=15 // pred_check_branch
          %595 = sbr.rel (%p593) target = $region32
        $region31: #{tpu_custom_call.1} parent=15 // pred_region
          %p596 = scmp.lt.s32.totalorder %s46, 1
          %s597 = scalar_select %p596, %s46, 1
          %s598 = smul.addr %s597, 8
          %s599 = smul.addr %s598, 4
          %s600 = scalar_lea.vmem %s3, %s599
        $region32: #{tpu_custom_call.1} parent=15 // pred_fallthru
          _
        // Predicated region
        $region33: #{tpu_custom_call.1} parent=15 // pred_check
          %p601 = pneg %p174
        $region34: #{tpu_custom_call.1} parent=15 // pred_check_branch
          %603 = sbr.rel (%p601) target = $region36
        $region35: #{tpu_custom_call.1} parent=15 // pred_region
          %s604 = sand.u32 %s38, 1
          %s605 = scalar_lea.sflag [#allocation11], %s604
          %s606 = sand.u32 %s164, 1
          %s607 = scalar_lea.vmem [#allocation10], %s606
          %609 = vsyncadd %s605, 0
          %s610 = scalar_lea.hbm %s4, %s46
          %s612 = sshll.u32 %s610, 4
          %s613 = int_to_ptr.hbm [resolvable:$true] %s612
          %s614 = sshll.u32 %s607, 4
          %s615 = int_to_ptr.vmem [resolvable:$true] %s614
          %617 = dma.hbm_to_vmem [thread:$0]  %s613, 16, %s615, %s605
        $region36: #{tpu_custom_call.1} parent=15 // pred_fallthru
          _
        // Predicated region
        $region37: #{tpu_custom_call.1} parent=15 // pred_check
          %p618 = pneg %p200
        $region38: #{tpu_custom_call.1} parent=15 // pred_check_branch
          %620 = sbr.rel (%p618) target = $region40
        $region39: #{tpu_custom_call.1} parent=15 // pred_region
          %p621 = scmp.lt.s32.totalorder %s46, 1
          %s622 = scalar_select %p621, %s46, 1
          %s623 = smul.addr %s622, 8
          %s624 = smul.addr %s623, 4
          %s625 = scalar_lea.vmem %s5, %s624
        $region40: #{tpu_custom_call.1} parent=15 // pred_fallthru
          _
        // Predicated region
        $region41: #{tpu_custom_call.1} parent=15 // pred_check
          %p626 = pneg %p226
        $region42: #{tpu_custom_call.1} parent=15 // pred_check_branch
          %628 = sbr.rel (%p626) target = $region44
        $region43: #{tpu_custom_call.1} parent=15 // pred_region
          %s629 = sand.u32 %s38, 1
          %s630 = scalar_lea.sflag [#allocation11], %s629
          %s631 = sand.u32 %s216, 1
          %s632 = scalar_lea.vmem [#allocation12], %s631
          %634 = vsyncadd %s630, 0
          %s635 = scalar_lea.hbm %s6, %s46
          %s637 = sshll.u32 %s635, 4
          %s638 = int_to_ptr.hbm [resolvable:$true] %s637
          %s639 = sshll.u32 %s632, 4
          %s640 = int_to_ptr.vmem [resolvable:$true] %s639
          %642 = dma.hbm_to_vmem [thread:$0]  %s638, 16, %s640, %s630
        $region44: #{tpu_custom_call.1} parent=15 // pred_fallthru
          _
        // Predicated region
        $region45: #{tpu_custom_call.1} parent=15 // pred_check
          %p643 = pneg %p252
        $region46: #{tpu_custom_call.1} parent=15 // pred_check_branch
          %645 = sbr.rel (%p643) target = $region48
        $region47: #{tpu_custom_call.1} parent=15 // pred_region
          %p646 = scmp.lt.s32.totalorder %s46, 1
          %s647 = scalar_select %p646, %s46, 1
          %s648 = smul.addr %s647, 8
          %s649 = smul.addr %s648, 4
          %s650 = scalar_lea.vmem %s7, %s649
        $region48: #{tpu_custom_call.1} parent=15 // pred_fallthru
          _
        // Predicated region
        $region49: #{tpu_custom_call.1} parent=15 // pred_check
          %p651 = pneg %p278
        $region50: #{tpu_custom_call.1} parent=15 // pred_check_branch
          %653 = sbr.rel (%p651) target = $region52
        $region51: #{tpu_custom_call.1} parent=15 // pred_region
          %s654 = sand.u32 %s38, 1
          %s655 = scalar_lea.sflag [#allocation14], %s654
          %s656 = sand.u32 %s268, 1
          %s657 = scalar_lea.vmem [#allocation13], %s656
          %659 = vsyncadd %s655, 0
          %s660 = scalar_lea.hbm %s8, %s46
          %s662 = sshll.u32 %s660, 4
          %s663 = int_to_ptr.hbm [resolvable:$true] %s662
          %s664 = sshll.u32 %s657, 4
          %s665 = int_to_ptr.vmem [resolvable:$true] %s664
          %667 = dma.hbm_to_vmem [thread:$0]  %s663, 16, %s665, %s655
        $region52: #{tpu_custom_call.1} parent=15 // pred_fallthru
          _
        // Predicated region
        $region53: #{tpu_custom_call.1} parent=15 // pred_check
          %p668 = pneg %p304
        $region54: #{tpu_custom_call.1} parent=15 // pred_check_branch
          %670 = sbr.rel (%p668) target = $region56
        $region55: #{tpu_custom_call.1} parent=15 // pred_region
          %p671 = scmp.lt.s32.totalorder %s46, 1
          %s672 = scalar_select %p671, %s46, 1
          %s673 = smul.addr %s672, 8
          %s674 = smul.addr %s673, 4
          %s675 = scalar_lea.vmem %s9, %s674
        $region56: #{tpu_custom_call.1} parent=15 // pred_fallthru
          _
        // Predicated region
        $region57: #{tpu_custom_call.1} parent=15 // pred_check
          %p676 = pneg %p330
        $region58: #{tpu_custom_call.1} parent=15 // pred_check_branch
          %678 = sbr.rel (%p676) target = $region60
        $region59: #{tpu_custom_call.1} parent=15 // pred_region
          %p679 = scmp.lt.s32.totalorder %s46, 1
          %s680 = scalar_select %p679, %s46, 1
          %s681 = scalar_lea.vmem %s10, %s680
        $region60: #{tpu_custom_call.1} parent=15 // pred_fallthru
          _
        // Predicated region
        $region61: #{tpu_custom_call.1} parent=15 // pred_check
          %p682 = pneg %p356
        $region62: #{tpu_custom_call.1} parent=15 // pred_check_branch
          %684 = sbr.rel (%p682) target = $region64
        $region63: #{tpu_custom_call.1} parent=15 // pred_region
          %p685 = scmp.lt.s32.totalorder %s46, 1
          %s686 = scalar_select %p685, %s46, 1
          %s687 = scalar_lea.vmem %s11, %s686
        $region64: #{tpu_custom_call.1} parent=15 // pred_fallthru
          _
        // Predicated region
        $region65: #{tpu_custom_call.1} parent=15 // pred_check
          %p688 = pneg %p382
        $region66: #{tpu_custom_call.1} parent=15 // pred_check_branch
          %690 = sbr.rel (%p688) target = $region68
        $region67: #{tpu_custom_call.1} parent=15 // pred_region
          %s691 = sand.u32 %s38, 1
          %s692 = scalar_lea.sflag [#allocation14], %s691
          %s693 = sand.u32 %s372, 1
          %s694 = scalar_lea.vmem [#allocation15], %s693
          %696 = vsyncadd %s692, 0
          %s697 = scalar_lea.hbm %s12, %s46
          %s699 = sshll.u32 %s697, 4
          %s700 = int_to_ptr.hbm [resolvable:$true] %s699
          %s701 = sshll.u32 %s694, 4
          %s702 = int_to_ptr.vmem [resolvable:$true] %s701
          %704 = dma.hbm_to_vmem [thread:$0]  %s700, 16, %s702, %s692
        $region68: #{tpu_custom_call.1} parent=15 // pred_fallthru
          _
        // Predicated region
        $region69: #{tpu_custom_call.1} parent=15 // pred_check
          %p705 = pneg %p408
        $region70: #{tpu_custom_call.1} parent=15 // pred_check_branch
          %707 = sbr.rel (%p705) target = $region72
        $region71: #{tpu_custom_call.1} parent=15 // pred_region
          %p708 = scmp.lt.s32.totalorder %s46, 1
          %s709 = scalar_select %p708, %s46, 1
          %s710 = smul.addr %s709, 16
          %s711 = smul.addr %s710, 4
          %s712 = scalar_lea.vmem %s13, %s711
        $region72: #{tpu_custom_call.1} parent=15 // pred_fallthru
          _
        // Predicated region
        $region73: #{tpu_custom_call.1} parent=15 // pred_check
          %p713 = pneg %p434
        $region74: #{tpu_custom_call.1} parent=15 // pred_check_branch
          %715 = sbr.rel (%p713) target = $region76
        $region75: #{tpu_custom_call.1} parent=15 // pred_region
          %p716 = scmp.lt.s32.totalorder %s46, 1
          %s717 = scalar_select %p716, %s46, 1
          %s718 = smul.addr %s717, 2
          %s719 = scalar_lea.vmem %s14, %s718
        $region76: #{tpu_custom_call.1} parent=15 // pred_fallthru
          _
        // Predicated region
        $region77: #{tpu_custom_call.1} parent=15 // pred_check
          %p720 = pneg %p460
        $region78: #{tpu_custom_call.1} parent=15 // pred_check_branch
          %722 = sbr.rel (%p720) target = $region80
        $region79: #{tpu_custom_call.1} parent=15 // pred_region
          %p723 = scmp.lt.s32.totalorder %s46, 1
          %s724 = scalar_select %p723, %s46, 1
          %s725 = smul.addr %s724, 32
          %s726 = smul.addr %s725, 4
          %s727 = scalar_lea.vmem %s15, %s726
        $region80: #{tpu_custom_call.1} parent=15 // pred_fallthru
          _
        // Predicated region
        $region81: #{tpu_custom_call.1} parent=15 // pred_check
          %p728 = pneg %p486
        $region82: #{tpu_custom_call.1} parent=15 // pred_check_branch
          %730 = sbr.rel (%p728) target = $region84
        $region83: #{tpu_custom_call.1} parent=15 // pred_region
          %p731 = scmp.lt.s32.totalorder %s46, 1
          %s732 = scalar_select %p731, %s46, 1
          %s733 = scalar_lea.vmem %s16, %s732
        $region84: #{tpu_custom_call.1} parent=15 // pred_fallthru
          _
      $region16: #{tpu_custom_call.1} parent=5 // pred_fallthru
        _
      %p734 = scmp.le.s32.totalorder 1, %s38
      %p735 = scmp.lt.s32.totalorder %s38, 5
      %p736 = pnand %p734, %p735
      %p737 = pneg %p736
      // Predicated region
      $region85: #{tpu_custom_call.1} parent=5 // pred_check
        _
      $region86: #{tpu_custom_call.1} parent=5 // pred_check_branch
        %739 = sbr.rel (%p736) target = $region88
      $region87: #{tpu_custom_call.1} parent=5 // pred_region
        %s740 = ssub.s32 %s38, 1
        %s741 = sand.u32 %s63, 1
        %s742 = scalar_lea.sflag [#allocation5], %s741
        %s743 = sand.u32 %s63, 1
        %s744 = smul.addr %s743, 16
        %s745 = scalar_lea.vmem [#allocation4], %s744
        // Predicated region
        $region89: #{tpu_custom_call.1} parent=87 // pred_check
          %p746 = pneg %p76
        $region90: #{tpu_custom_call.1} parent=87 // pred_check_branch
          %748 = sbr.rel (%p746) target = $region92
        $region91: #{tpu_custom_call.1} parent=87 // pred_region
          %750 = dma.done %s742, 256
        $region92: #{tpu_custom_call.1} parent=87 // pred_fallthru
          _
        %s751 = sand.u32 %s43, 1
        %s752 = scalar_lea.sflag [#allocation8], %s751
        %s753 = sand.u32 %s89, 1
        %s754 = scalar_lea.vmem [#allocation7], %s753
        // Predicated region
        $region93: #{tpu_custom_call.1} parent=87 // pred_check
          %p755 = pneg %p102
        $region94: #{tpu_custom_call.1} parent=87 // pred_check_branch
          %757 = sbr.rel (%p755) target = $region96
        $region95: #{tpu_custom_call.1} parent=87 // pred_region
          %759 = dma.done %s752, 16
        $region96: #{tpu_custom_call.1} parent=87 // pred_fallthru
          _
        %s760 = sand.u32 %s43, 1
        %s761 = scalar_lea.sflag [#allocation8], %s760
        %s762 = sand.u32 %s115, 1
        %s763 = scalar_lea.vmem [#allocation9], %s762
        // Predicated region
        $region97: #{tpu_custom_call.1} parent=87 // pred_check
          %p764 = pneg %p128
        $region98: #{tpu_custom_call.1} parent=87 // pred_check_branch
          %766 = sbr.rel (%p764) target = $region100
        $region99: #{tpu_custom_call.1} parent=87 // pred_region
          %768 = dma.done %s761, 16
        $region100: #{tpu_custom_call.1} parent=87 // pred_fallthru
          _
        %s769 = sand.u32 %s43, 1
        %s770 = scalar_lea.sflag [#allocation11], %s769
        %s771 = sand.u32 %s167, 1
        %s772 = scalar_lea.vmem [#allocation10], %s771
        // Predicated region
        $region101: #{tpu_custom_call.1} parent=87 // pred_check
          %p773 = pneg %p180
        $region102: #{tpu_custom_call.1} parent=87 // pred_check_branch
          %775 = sbr.rel (%p773) target = $region104
        $region103: #{tpu_custom_call.1} parent=87 // pred_region
          %777 = dma.done %s770, 16
        $region104: #{tpu_custom_call.1} parent=87 // pred_fallthru
          _
        %s778 = sand.u32 %s43, 1
        %s779 = scalar_lea.sflag [#allocation11], %s778
        %s780 = sand.u32 %s219, 1
        %s781 = scalar_lea.vmem [#allocation12], %s780
        // Predicated region
        $region105: #{tpu_custom_call.1} parent=87 // pred_check
          %p782 = pneg %p232
        $region106: #{tpu_custom_call.1} parent=87 // pred_check_branch
          %784 = sbr.rel (%p782) target = $region108
        $region107: #{tpu_custom_call.1} parent=87 // pred_region
          %786 = dma.done %s779, 16
        $region108: #{tpu_custom_call.1} parent=87 // pred_fallthru
          _
        %s787 = sand.u32 %s43, 1
        %s788 = scalar_lea.sflag [#allocation14], %s787
        %s789 = sand.u32 %s271, 1
        %s790 = scalar_lea.vmem [#allocation13], %s789
        // Predicated region
        $region109: #{tpu_custom_call.1} parent=87 // pred_check
          %p791 = pneg %p284
        $region110: #{tpu_custom_call.1} parent=87 // pred_check_branch
          %793 = sbr.rel (%p791) target = $region112
        $region111: #{tpu_custom_call.1} parent=87 // pred_region
          %795 = dma.done %s788, 16
        $region112: #{tpu_custom_call.1} parent=87 // pred_fallthru
          _
        %s796 = sand.u32 %s43, 1
        %s797 = scalar_lea.sflag [#allocation14], %s796
        %s798 = sand.u32 %s375, 1
        %s799 = scalar_lea.vmem [#allocation15], %s798
        // Predicated region
        $region113: #{tpu_custom_call.1} parent=87 // pred_check
          %p800 = pneg %p388
        $region114: #{tpu_custom_call.1} parent=87 // pred_check_branch
          %802 = sbr.rel (%p800) target = $region116
        $region115: #{tpu_custom_call.1} parent=87 // pred_region
          %804 = dma.done %s797, 16
        $region116: #{tpu_custom_call.1} parent=87 // pred_fallthru
          _
        %s805 = sand.u32 %s63, 1
        %s806 = scalar_lea.sflag [#allocation5], %s805
        %s807 = sand.u32 %s63, 1
        %s808 = smul.addr %s807, 16
        %s809 = scalar_lea.vmem [#allocation4], %s808
        %p810 = pneg %p76
        %p811 = pneg %p73
        %s812 = sand.u32 %s43, 1
        %s813 = scalar_lea.sflag [#allocation8], %s812
        %s814 = sand.u32 %s89, 1
        %s815 = scalar_lea.vmem [#allocation7], %s814
        %p816 = pneg %p102
        %p817 = pneg %p99
        %s818 = sand.u32 %s43, 1
        %s819 = scalar_lea.sflag [#allocation8], %s818
        %s820 = sand.u32 %s115, 1
        %s821 = scalar_lea.vmem [#allocation9], %s820
        %p822 = pneg %p128
        %p823 = pneg %p125
        %p824 = scmp.lt.s32.totalorder %s48, 1
        %s825 = scalar_select %p824, %s48, 1
        %s826 = smul.addr %s825, 8
        %s827 = smul.addr %s826, 4
        %s828 = scalar_lea.vmem %s3, %s827
        %p829 = pneg %p154
        %p830 = pneg %p151
        %s831 = sand.u32 %s43, 1
        %s832 = scalar_lea.sflag [#allocation11], %s831
        %s833 = sand.u32 %s167, 1
        %s834 = scalar_lea.vmem [#allocation10], %s833
        %p835 = pneg %p180
        %p836 = pneg %p177
        %p837 = scmp.lt.s32.totalorder %s48, 1
        %s838 = scalar_select %p837, %s48, 1
        %s839 = smul.addr %s838, 8
        %s840 = smul.addr %s839, 4
        %s841 = scalar_lea.vmem %s5, %s840
        %p842 = pneg %p206
        %p843 = pneg %p203
        %s844 = sand.u32 %s43, 1
        %s845 = scalar_lea.sflag [#allocation11], %s844
        %s846 = sand.u32 %s219, 1
        %s847 = scalar_lea.vmem [#allocation12], %s846
        %p848 = pneg %p232
        %p849 = pneg %p229
        %p850 = scmp.lt.s32.totalorder %s48, 1
        %s851 = scalar_select %p850, %s48, 1
        %s852 = smul.addr %s851, 8
        %s853 = smul.addr %s852, 4
        %s854 = scalar_lea.vmem %s7, %s853
        %p855 = pneg %p258
        %p856 = pneg %p255
        %s857 = sand.u32 %s43, 1
        %s858 = scalar_lea.sflag [#allocation14], %s857
        %s859 = sand.u32 %s271, 1
        %s860 = scalar_lea.vmem [#allocation13], %s859
        %p861 = pneg %p284
        %p862 = pneg %p281
        %p863 = scmp.lt.s32.totalorder %s48, 1
        %s864 = scalar_select %p863, %s48, 1
        %s865 = smul.addr %s864, 8
        %s866 = smul.addr %s865, 4
        %s867 = scalar_lea.vmem %s9, %s866
        %p868 = pneg %p310
        %p869 = pneg %p307
        %p870 = scmp.lt.s32.totalorder %s48, 1
        %s871 = scalar_select %p870, %s48, 1
        %s872 = scalar_lea.vmem %s10, %s871
        %p873 = pneg %p336
        %p874 = pneg %p333
        %p875 = scmp.lt.s32.totalorder %s48, 1
        %s876 = scalar_select %p875, %s48, 1
        %s877 = scalar_lea.vmem %s11, %s876
        %p878 = pneg %p362
        %p879 = pneg %p359
        %s880 = sand.u32 %s43, 1
        %s881 = scalar_lea.sflag [#allocation14], %s880
        %s882 = sand.u32 %s375, 1
        %s883 = scalar_lea.vmem [#allocation15], %s882
        %p884 = pneg %p388
        %p885 = pneg %p385
        %p886 = scmp.lt.s32.totalorder %s48, 1
        %s887 = scalar_select %p886, %s48, 1
        %s888 = smul.addr %s887, 16
        %s889 = smul.addr %s888, 4
        %s890 = scalar_lea.vmem %s13, %s889
        %p891 = pneg %p414
        %p892 = pneg %p411
        %p893 = scmp.lt.s32.totalorder %s48, 1
        %s894 = scalar_select %p893, %s48, 1
        %s895 = smul.addr %s894, 2
        %s896 = scalar_lea.vmem %s14, %s895
        %p897 = pneg %p440
        %p898 = pneg %p437
        %p899 = scmp.lt.s32.totalorder %s48, 1
        %s900 = scalar_select %p899, %s48, 1
        %s901 = smul.addr %s900, 32
        %s902 = smul.addr %s901, 4
        %s903 = scalar_lea.vmem %s15, %s902
        %p904 = pneg %p466
        %p905 = pneg %p463
        %p906 = scmp.lt.s32.totalorder %s48, 1
        %s907 = scalar_select %p906, %s48, 1
        %s908 = scalar_lea.vmem %s16, %s907
        %p909 = pneg %p492
        %p910 = pneg %p489
        %p911 = pneg %p518
        %p912 = pneg %p515
        %s913 = sand.u32 %s505, 1
        %s914 = scalar_lea.sflag [#allocation6], %s913
        %s915 = sand.u32 %s505, 1
        %s916 = smul.addr %s915, 16
        %s917 = scalar_lea.vmem [#allocation16], %s916
        %s918 = smul.u32 2, %s47
        %p919 = scmp.lt.s32.totalorder %s48, 1
        %s920 = scalar_select %p919, %s48, 1
        %s921 = smul.addr %s920, 8
        %s922 = smul.addr %s921, 4
        %s923 = scalar_lea.vmem %s3, %s922
        %p924 = scmp.lt.s32.totalorder %s48, 1
        %s925 = scalar_select %p924, %s48, 1
        %s926 = smul.addr %s925, 8
        %s927 = smul.addr %s926, 4
        %s928 = scalar_lea.vmem %s5, %s927
        %p929 = scmp.lt.s32.totalorder %s48, 1
        %s930 = scalar_select %p929, %s48, 1
        %s931 = smul.addr %s930, 8
        %s932 = smul.addr %s931, 4
        %s933 = scalar_lea.vmem %s7, %s932
        %p934 = scmp.lt.s32.totalorder %s48, 1
        %s935 = scalar_select %p934, %s48, 1
        %s936 = smul.addr %s935, 8
        %s937 = smul.addr %s936, 4
        %s938 = scalar_lea.vmem %s9, %s937
        %p939 = scmp.lt.s32.totalorder %s48, 1
        %s940 = scalar_select %p939, %s48, 1
        %s941 = scalar_lea.vmem %s10, %s940
        %p942 = scmp.lt.s32.totalorder %s48, 1
        %s943 = scalar_select %p942, %s48, 1
        %s944 = scalar_lea.vmem %s11, %s943
        %p945 = scmp.lt.s32.totalorder %s48, 1
        %s946 = scalar_select %p945, %s48, 1
        %s947 = smul.addr %s946, 16
        %s948 = smul.addr %s947, 4
        %s949 = scalar_lea.vmem %s13, %s948
        %p950 = scmp.lt.s32.totalorder %s48, 1
        %s951 = scalar_select %p950, %s48, 1
        %s952 = smul.addr %s951, 2
        %s953 = scalar_lea.vmem %s14, %s952
        %p954 = scmp.lt.s32.totalorder %s48, 1
        %s955 = scalar_select %p954, %s48, 1
        %s956 = smul.addr %s955, 32
        %s957 = smul.addr %s956, 4
        %s958 = scalar_lea.vmem %s15, %s957
        %p959 = scmp.lt.s32.totalorder %s48, 1
        %s960 = scalar_select %p959, %s48, 1
        %s961 = scalar_lea.vmem %s16, %s960
        %s962 = smul.u32 2, %s47
        %p964 = scmp.eq.s32.totalorder %s48, 0
        // Predicated region
        $region117: #{tpu_custom_call.1} parent=87 // pred_check
          %p965 = pneg %p964
        $region118: #{tpu_custom_call.1} parent=87 // pred_check_branch
          %967 = sbr.rel (%p965) target = $region120
        $region119: #{tpu_custom_call.1} parent=87 // pred_region
          %v968 = vld [vmem:[%s745] sm:$0xff]
          %v969 = vld [vmem:[%s745 + $0x8] sm:$0xff]
          %vm970 = vcmask 523264
          %971 = vst.msk [vmem:[#allocation2] sm:$0xff] %vm970, %v968
          %972 = vst.msk [vmem:[#allocation2 + $0x8] sm:$0xff] %vm970, %v969
        $region120: #{tpu_custom_call.1} parent=87 // pred_fallthru
          _
        %v973 = vld [vmem:[#allocation2] sm:$0xff]
        %v974 = vld [vmem:[#allocation2 + $0x8] sm:$0xff]
        %vm975 = vcmask 523264
        %v976 = vsel %vm975, %v973, 0.0
        %977 = vadd.xlane.f32.xlu0 %v976
        %v978 = vpop.xlane.xlu0 %977
        %v979 = vsel %vm975, %v974, 0.0
        %980 = vadd.xlane.f32.xlu0 %v979
        %v981 = vpop.xlane.xlu0 %980
        %v982 = vrcp.pop 64.0
        %v983 = vmul.f32 64.0, %v982
        %v984 = vsub.f32 1.0, %v983
        %v985 = vmul.f32 %v982, %v984
        %v986 = vadd.f32 %v982, %v985
        %vm987 = vweird.f32 %v982
        %v988 = vsel %vm987, %v982, %v986
        %v989 = vmul.f32 %v978, %v988
        %v990 = vmul.f32 %v981, %v988
        %v991 = vsub.f32 %v973, %v989
        %v992 = vsub.f32 %v974, %v990
        %v993 = vmul.f32 %v991, %v991
        %v994 = vmul.f32 %v992, %v992
        %v995 = vsel %vm975, %v993, 0.0
        %996 = vadd.xlane.f32.xlu0 %v995
        %v997 = vpop.xlane.xlu0 %996
        %v998 = vsel %vm975, %v994, 0.0
        %999 = vadd.xlane.f32.xlu0 %v998
        %v1000 = vpop.xlane.xlu0 %999
        %v1001 = vmul.f32 %v997, %v988
        %v1002 = vmul.f32 %v1000, %v988
        %v1003 = vadd.f32 %v1001, 1e-05
        %v1004 = vadd.f32 %v1002, 1e-05
        %v1005 = vrsqrt.pop %v1003
        %v1006 = vmul.f32 %v1005, %v1003
        %v1007 = vmul.f32 %v1006, %v1005
        %v1008 = vmul.f32 0.5, %v1007
        %v1009 = vsub.f32 1.5, %v1008
        %v1010 = vmul.f32 %v1005, %v1009
        %vm1011 = vweird.f32 %v1003
        %vm1012 = vweird.f32 %v1005
        %vm1013 = vmor %vm1011, %vm1012
        %v1014 = vsel %vm1013, %v1005, %v1010
        %v1015 = vrsqrt.pop %v1004
        %v1016 = vmul.f32 %v1015, %v1004
        %v1017 = vmul.f32 %v1016, %v1015
        %v1018 = vmul.f32 0.5, %v1017
        %v1019 = vsub.f32 1.5, %v1018
        %v1020 = vmul.f32 %v1015, %v1019
        %vm1021 = vweird.f32 %v1004
        %vm1022 = vweird.f32 %v1015
        %vm1023 = vmor %vm1021, %vm1022
        %v1024 = vsel %vm1023, %v1015, %v1020
        %v1025 = vmul.f32 %v991, %v1014
        %v1026 = vmul.f32 %v992, %v1024
        %v1027 = vld [vmem:[%s754] sm:$0x1]
        %v1029 = vperm.slane %v1027, 0
        %v1031 = vmul.f32 %v1025, %v1029
        %v1032 = vmul.f32 %v1026, %v1029
        %v1033 = vld [vmem:[%s763] sm:$0x1]
        %v1035 = vperm.slane %v1033, 0
        %v1037 = vadd.f32 %v1031, %v1035
        %v1038 = vadd.f32 %v1032, %v1035
        %v1039 = vpack.c.bf16 %v1038, %v1037
        %v1040 = vld [vmem:[%s923] sm:$0xf]
        %v1041 = vld [vmem:[%s923 + $0x4] sm:$0xf]
        %v1042 = vld [vmem:[%s923 + $0x8] sm:$0xf]
        %v1043 = vld [vmem:[%s923 + $0xc] sm:$0xf]
        %v1044 = vld [vmem:[%s923 + $0x10] sm:$0xf]
        %v1045 = vld [vmem:[%s923 + $0x14] sm:$0xf]
        %v1046 = vld [vmem:[%s923 + $0x18] sm:$0xf]
        %v1047 = vld [vmem:[%s923 + $0x1c] sm:$0xf]
        %v1048 = vld [vmem:[%s772] sm:$0x1]
        %v1050 = vperm.slane %v1048, 0
        %v1060 = vunpack.c.l.b16 %v1040
        %v1061 = vunpack.c.l.b16 %v1041
        %v1062 = vunpack.c.l.b16 %v1042
        %v1063 = vunpack.c.l.b16 %v1043
        %v1064 = vunpack.c.l.b16 %v1044
        %v1065 = vunpack.c.l.b16 %v1045
        %v1066 = vunpack.c.l.b16 %v1046
        %v1067 = vunpack.c.l.b16 %v1047
        %v1068 = vpack.c.b16 %v1061, %v1060
        %v1069 = vpack.c.b16 %v1063, %v1062
        %v1070 = vpack.c.b16 %v1065, %v1064
        %v1071 = vpack.c.b16 %v1067, %v1066
        %v1077 = vsel %vm975, %v1039, 0
        %1079 = vmatpush.bf16.msra.mxu0 0
        %1080 = vmatpush.bf16.msra.mxu0 0
        %1081 = vmatpush.bf16.msra.mxu0 0
        %1082 = vmatpush.bf16.msra.mxu0 0
        %1083 = vmatpush.bf16.msra.mxu0 %v1071
        %1084 = vmatpush.bf16.msra.mxu0 %v1070
        %1085 = vmatpush.bf16.msra.mxu0 %v1069
        %1086 = vmatpush.bf16.msra.mxu0 %v1068
        %1087 = vmatmul.bf16.gmra.mxu0 %v1077
        %v1088 = vpop.f32.mrf.mxu0
        %v1089 = vadd.f32 %v1050, %v1088
        %v1090 = vpop.f32.mrf.mxu0
        %v1091 = vadd.f32 %v1050, %v1090
        %1092 = vdwg.mxu0
        %v1093 = vld [vmem:[%s928] sm:$0xf]
        %v1094 = vld [vmem:[%s928 + $0x4] sm:$0xf]
        %v1095 = vld [vmem:[%s928 + $0x8] sm:$0xf]
        %v1096 = vld [vmem:[%s928 + $0xc] sm:$0xf]
        %v1097 = vld [vmem:[%s928 + $0x10] sm:$0xf]
        %v1098 = vld [vmem:[%s928 + $0x14] sm:$0xf]
        %v1099 = vld [vmem:[%s928 + $0x18] sm:$0xf]
        %v1100 = vld [vmem:[%s928 + $0x1c] sm:$0xf]
        %v1101 = vld [vmem:[%s781] sm:$0x1]
        %v1103 = vperm.slane %v1101, 0
        %v1113 = vunpack.c.l.b16 %v1093
        %v1114 = vunpack.c.l.b16 %v1094
        %v1115 = vunpack.c.l.b16 %v1095
        %v1116 = vunpack.c.l.b16 %v1096
        %v1117 = vunpack.c.l.b16 %v1097
        %v1118 = vunpack.c.l.b16 %v1098
        %v1119 = vunpack.c.l.b16 %v1099
        %v1120 = vunpack.c.l.b16 %v1100
        %v1121 = vpack.c.b16 %v1114, %v1113
        %v1122 = vpack.c.b16 %v1116, %v1115
        %v1123 = vpack.c.b16 %v1118, %v1117
        %v1124 = vpack.c.b16 %v1120, %v1119
        %1129 = vmatpush.bf16.msra.mxu0 0
        %1130 = vmatpush.bf16.msra.mxu0 0
        %1131 = vmatpush.bf16.msra.mxu0 0
        %1132 = vmatpush.bf16.msra.mxu0 0
        %1133 = vmatpush.bf16.msra.mxu0 %v1124
        %1134 = vmatpush.bf16.msra.mxu0 %v1123
        %1135 = vmatpush.bf16.msra.mxu0 %v1122
        %1136 = vmatpush.bf16.msra.mxu0 %v1121
        %1137 = vmatmul.bf16.gmra.mxu0 %v1077
        %v1138 = vpop.f32.mrf.mxu0
        %v1139 = vadd.f32 %v1103, %v1138
        %v1140 = vpop.f32.mrf.mxu0
        %v1141 = vadd.f32 %v1103, %v1140
        %1142 = vdwg.mxu0
        %v1143 = vld [vmem:[%s933] sm:$0xf]
        %v1144 = vld [vmem:[%s933 + $0x4] sm:$0xf]
        %v1145 = vld [vmem:[%s933 + $0x8] sm:$0xf]
        %v1146 = vld [vmem:[%s933 + $0xc] sm:$0xf]
        %v1147 = vld [vmem:[%s933 + $0x10] sm:$0xf]
        %v1148 = vld [vmem:[%s933 + $0x14] sm:$0xf]
        %v1149 = vld [vmem:[%s933 + $0x18] sm:$0xf]
        %v1150 = vld [vmem:[%s933 + $0x1c] sm:$0xf]
        %v1151 = vld [vmem:[%s790] sm:$0x1]
        %v1153 = vperm.slane %v1151, 0
        %v1163 = vunpack.c.l.b16 %v1143
        %v1164 = vunpack.c.l.b16 %v1144
        %v1165 = vunpack.c.l.b16 %v1145
        %v1166 = vunpack.c.l.b16 %v1146
        %v1167 = vunpack.c.l.b16 %v1147
        %v1168 = vunpack.c.l.b16 %v1148
        %v1169 = vunpack.c.l.b16 %v1149
        %v1170 = vunpack.c.l.b16 %v1150
        %v1171 = vpack.c.b16 %v1164, %v1163
        %v1172 = vpack.c.b16 %v1166, %v1165
        %v1173 = vpack.c.b16 %v1168, %v1167
        %v1174 = vpack.c.b16 %v1170, %v1169
        %1179 = vmatpush.bf16.msra.mxu0 0
        %1180 = vmatpush.bf16.msra.mxu0 0
        %1181 = vmatpush.bf16.msra.mxu0 0
        %1182 = vmatpush.bf16.msra.mxu0 0
        %1183 = vmatpush.bf16.msra.mxu0 %v1174
        %1184 = vmatpush.bf16.msra.mxu0 %v1173
        %1185 = vmatpush.bf16.msra.mxu0 %v1172
        %1186 = vmatpush.bf16.msra.mxu0 %v1171
        %1187 = vmatmul.bf16.gmra.mxu0 %v1077
        %v1188 = vpop.f32.mrf.mxu0
        %v1189 = vadd.f32 %v1153, %v1188
        %v1190 = vpop.f32.mrf.mxu0
        %v1191 = vadd.f32 %v1153, %v1190
        %1192 = vdwg.mxu0
        %v1193 = vpack.c.bf16 %v1089, %v1089
        %v1194 = vpack.c.bf16 %v1091, %v1091
        %v1195 = vpack.c.bf16 %v1139, %v1139
        %v1196 = vpack.c.bf16 %v1141, %v1141
        %v1197 = vpack.c.bf16 %v1189, %v1189
        %v1198 = vpack.c.bf16 %v1191, %v1191
        %vm1199 = vcmask 130048
        %v1201 = vsel %vm1199, %v1193, 0
        %v1204 = vsel %vm1199, %v1195, 0
        %1206 = vmatpush.bf16.xpose.msra.mxu0 0
        %1207 = vmatpush.bf16.xpose.msra.mxu0 0
        %1208 = vmatpush.bf16.xpose.msra.mxu0 0
        %1209 = vmatpush.bf16.xpose.msra.mxu0 0
        %1210 = vmatpush.bf16.xpose.msra.mxu0 0
        %1211 = vmatpush.bf16.xpose.msra.mxu0 0
        %1212 = vmatpush.bf16.xpose.msra.mxu0 0
        %1213 = vmatpush.bf16.xpose.msra.mxu0 %v1204
        %1214 = vmatmul.bf16.gmra.mxu0 %v1201
        %v1215 = vpop.f32.mrf.mxu0
        %v1216 = vadd.f32 0.0, %v1215
        %v1217 = vpop.f32.mrf.mxu0
        %1218 = vdwg.mxu0
        %v1220 = vsel %vm1199, %v1194, 0
        %v1223 = vsel %vm1199, %v1196, 0
        %1225 = vmatpush.bf16.xpose.msra.mxu0 0
        %1226 = vmatpush.bf16.xpose.msra.mxu0 0
        %1227 = vmatpush.bf16.xpose.msra.mxu0 0
        %1228 = vmatpush.bf16.xpose.msra.mxu0 0
        %1229 = vmatpush.bf16.xpose.msra.mxu0 0
        %1230 = vmatpush.bf16.xpose.msra.mxu0 0
        %1231 = vmatpush.bf16.xpose.msra.mxu0 0
        %1232 = vmatpush.bf16.xpose.msra.mxu0 %v1223
        %1233 = vmatmul.bf16.gmra.mxu0 %v1220
        %v1234 = vpop.f32.mrf.mxu0
        %v1235 = vadd.f32 0.0, %v1234
        %v1236 = vpop.f32.mrf.mxu0
        %1237 = vdwg.mxu0
        %vm1238 = vcmask 64512
        %v1239 = vsel %vm1238, %v1216, -inf
        %1240 = vmax.xlane.f32.xlu0 %v1239
        %v1241 = vpop.xlane.xlu0 %1240
        %v1242 = vsel %vm1238, %v1235, -inf
        %1243 = vmax.xlane.f32.xlu0 %v1242
        %v1244 = vpop.xlane.xlu0 %1243
        %v1245 = vsub.f32 %v1216, %v1241
        %v1246 = vsub.f32 %v1235, %v1244
        %v1247 = vmul.f32 %v1245, 1.442695
        %v1248 = vpow.pop %v1247
        %v1249 = vmul.f32 %v1246, 1.442695
        %v1250 = vpow.pop %v1249
        %v1251 = vsel %vm1238, %v1248, 0.0
        %1252 = vadd.xlane.f32.xlu0 %v1251
        %v1253 = vpop.xlane.xlu0 %1252
        %v1254 = vsel %vm1238, %v1250, 0.0
        %1255 = vadd.xlane.f32.xlu0 %v1254
        %v1256 = vpop.xlane.xlu0 %1255
        %v1257 = vrcp.pop %v1253
        %v1258 = vrcp.pop %v1256
        %v1259 = vmul.f32 %v1248, %v1257
        %v1260 = vmul.f32 %v1250, %v1258
        %v1261 = vpack.c.bf16 %v1259, %v1259
        %v1262 = vpack.c.bf16 %v1260, %v1260
        %v1264 = vsel %vm1238, %v1261, 0
        %vm1266 = vcmask 1043456
        %v1268 = vsel %vm1266, %v1197, 0
        %1270 = vmatpush.bf16.msra.mxu0 0
        %1271 = vmatpush.bf16.msra.mxu0 0
        %1272 = vmatpush.bf16.msra.mxu0 0
        %1273 = vmatpush.bf16.msra.mxu0 0
        %1274 = vmatpush.bf16.msra.mxu0 0
        %1275 = vmatpush.bf16.msra.mxu0 0
        %1276 = vmatpush.bf16.msra.mxu0 0
        %1277 = vmatpush.bf16.msra.mxu0 %v1268
        %1278 = vmatmul.bf16.gmra.mxu0 %v1264
        %v1279 = vpop.f32.mrf.mxu0
        %v1280 = vadd.f32 0.0, %v1279
        %v1281 = vpop.f32.mrf.mxu0
        %1282 = vdwg.mxu0
        %v1284 = vsel %vm1238, %v1262, 0
        %v1287 = vsel %vm1266, %v1198, 0
        %1289 = vmatpush.bf16.msra.mxu0 0
        %1290 = vmatpush.bf16.msra.mxu0 0
        %1291 = vmatpush.bf16.msra.mxu0 0
        %1292 = vmatpush.bf16.msra.mxu0 0
        %1293 = vmatpush.bf16.msra.mxu0 0
        %1294 = vmatpush.bf16.msra.mxu0 0
        %1295 = vmatpush.bf16.msra.mxu0 0
        %1296 = vmatpush.bf16.msra.mxu0 %v1287
        %1297 = vmatmul.bf16.gmra.mxu0 %v1284
        %v1298 = vpop.f32.mrf.mxu0
        %v1299 = vadd.f32 0.0, %v1298
        %v1300 = vpop.f32.mrf.mxu0
        %1301 = vdwg.mxu0
        %1302 = vst.msk [vmem:[#allocation3] sm:$0xff] %vm1199, %v1280
        %1303 = vst.msk [vmem:[#allocation3 + $0x8] sm:$0xff] %vm1199, %v1299
        %v1305 = vunpack.c.l.b16 %v1193
        %v1306 = vpack.c.b16 %v1305, %v1305
        %1307 = vrot.lane.b32.xlu0 %v1306, 112
        %v1308 = vpop.permute.xlu0 %1307
        %v1310 = vunpack.c.l.b16 %v1195
        %v1311 = vpack.c.b16 %v1310, %v1310
        %1312 = vrot.lane.b32.xlu0 %v1311, 112
        %v1313 = vpop.permute.xlu0 %1312
        %v1315 = vsel %vm1199, %v1308, 0
        %v1318 = vsel %vm1199, %v1313, 0
        %1320 = vmatpush.bf16.xpose.msra.mxu0 0
        %1321 = vmatpush.bf16.xpose.msra.mxu0 0
        %1322 = vmatpush.bf16.xpose.msra.mxu0 0
        %1323 = vmatpush.bf16.xpose.msra.mxu0 0
        %1324 = vmatpush.bf16.xpose.msra.mxu0 0
        %1325 = vmatpush.bf16.xpose.msra.mxu0 0
        %1326 = vmatpush.bf16.xpose.msra.mxu0 0
        %1327 = vmatpush.bf16.xpose.msra.mxu0 %v1318
        %1328 = vmatmul.bf16.gmra.mxu0 %v1315
        %v1329 = vpop.f32.mrf.mxu0
        %v1330 = vadd.f32 0.0, %v1329
        %v1331 = vpop.f32.mrf.mxu0
        %1332 = vdwg.mxu0
        %v1334 = vunpack.c.l.b16 %v1194
        %v1335 = vpack.c.b16 %v1334, %v1334
        %1336 = vrot.lane.b32.xlu0 %v1335, 112
        %v1337 = vpop.permute.xlu0 %1336
        %v1339 = vunpack.c.l.b16 %v1196
        %v1340 = vpack.c.b16 %v1339, %v1339
        %1341 = vrot.lane.b32.xlu0 %v1340, 112
        %v1342 = vpop.permute.xlu0 %1341
        %v1344 = vsel %vm1199, %v1337, 0
        %v1347 = vsel %vm1199, %v1342, 0
        %1349 = vmatpush.bf16.xpose.msra.mxu0 0
        %1350 = vmatpush.bf16.xpose.msra.mxu0 0
        %1351 = vmatpush.bf16.xpose.msra.mxu0 0
        %1352 = vmatpush.bf16.xpose.msra.mxu0 0
        %1353 = vmatpush.bf16.xpose.msra.mxu0 0
        %1354 = vmatpush.bf16.xpose.msra.mxu0 0
        %1355 = vmatpush.bf16.xpose.msra.mxu0 0
        %1356 = vmatpush.bf16.xpose.msra.mxu0 %v1347
        %1357 = vmatmul.bf16.gmra.mxu0 %v1344
        %v1358 = vpop.f32.mrf.mxu0
        %v1359 = vadd.f32 0.0, %v1358
        %v1360 = vpop.f32.mrf.mxu0
        %1361 = vdwg.mxu0
        %v1362 = vsel %vm1238, %v1330, -inf
        %1363 = vmax.xlane.f32.xlu0 %v1362
        %v1364 = vpop.xlane.xlu0 %1363
        %v1365 = vsel %vm1238, %v1359, -inf
        %1366 = vmax.xlane.f32.xlu0 %v1365
        %v1367 = vpop.xlane.xlu0 %1366
        %v1368 = vsub.f32 %v1330, %v1364
        %v1369 = vsub.f32 %v1359, %v1367
        %v1370 = vmul.f32 %v1368, 1.442695
        %v1371 = vpow.pop %v1370
        %v1372 = vmul.f32 %v1369, 1.442695
        %v1373 = vpow.pop %v1372
        %v1374 = vsel %vm1238, %v1371, 0.0
        %1375 = vadd.xlane.f32.xlu0 %v1374
        %v1376 = vpop.xlane.xlu0 %1375
        %v1377 = vsel %vm1238, %v1373, 0.0
        %1378 = vadd.xlane.f32.xlu0 %v1377
        %v1379 = vpop.xlane.xlu0 %1378
        %v1380 = vrcp.pop %v1376
        %v1381 = vrcp.pop %v1379
        %v1382 = vmul.f32 %v1371, %v1380
        %v1383 = vmul.f32 %v1373, %v1381
        %v1384 = vpack.c.bf16 %v1382, %v1382
        %v1385 = vpack.c.bf16 %v1383, %v1383
        %v1387 = vunpack.c.l.b16 %v1197
        %v1388 = vpack.c.b16 %v1387, %v1387
        %1389 = vrot.lane.b32.xlu0 %v1388, 112
        %v1390 = vpop.permute.xlu0 %1389
        %v1392 = vsel %vm1238, %v1384, 0
        %v1395 = vsel %vm1266, %v1390, 0
        %1397 = vmatpush.bf16.msra.mxu0 0
        %1398 = vmatpush.bf16.msra.mxu0 0
        %1399 = vmatpush.bf16.msra.mxu0 0
        %1400 = vmatpush.bf16.msra.mxu0 0
        %1401 = vmatpush.bf16.msra.mxu0 0
        %1402 = vmatpush.bf16.msra.mxu0 0
        %1403 = vmatpush.bf16.msra.mxu0 0
        %1404 = vmatpush.bf16.msra.mxu0 %v1395
        %1405 = vmatmul.bf16.gmra.mxu0 %v1392
        %v1406 = vpop.f32.mrf.mxu0
        %v1407 = vadd.f32 0.0, %v1406
        %v1408 = vpop.f32.mrf.mxu0
        %1409 = vdwg.mxu0
        %v1411 = vunpack.c.l.b16 %v1198
        %v1412 = vpack.c.b16 %v1411, %v1411
        %1413 = vrot.lane.b32.xlu0 %v1412, 112
        %v1414 = vpop.permute.xlu0 %1413
        %v1416 = vsel %vm1238, %v1385, 0
        %v1419 = vsel %vm1266, %v1414, 0
        %1421 = vmatpush.bf16.msra.mxu0 0
        %1422 = vmatpush.bf16.msra.mxu0 0
        %1423 = vmatpush.bf16.msra.mxu0 0
        %1424 = vmatpush.bf16.msra.mxu0 0
        %1425 = vmatpush.bf16.msra.mxu0 0
        %1426 = vmatpush.bf16.msra.mxu0 0
        %1427 = vmatpush.bf16.msra.mxu0 0
        %1428 = vmatpush.bf16.msra.mxu0 %v1419
        %1429 = vmatmul.bf16.gmra.mxu0 %v1416
        %v1430 = vpop.f32.mrf.mxu0
        %v1431 = vadd.f32 0.0, %v1430
        %v1432 = vpop.f32.mrf.mxu0
        %1433 = vdwg.mxu0
        %1436 = vrot.lane.b32.xlu0 %v1407, 16
        %v1437 = vpop.permute.xlu0 %1436
        %1438 = vrot.lane.b32.xlu0 %v1431, 16
        %v1439 = vpop.permute.xlu0 %1438
        %vm1442 = vcmask 261248
        %1443 = vst.msk [vmem:[#allocation3] sm:$0xff] %vm1442, %v1437
        %1444 = vst.msk [vmem:[#allocation3 + $0x8] sm:$0xff] %vm1442, %v1439
        %1445 = vrot.lane.b32.xlu0 %v1306, 96
        %v1446 = vpop.permute.xlu0 %1445
        %1447 = vrot.lane.b32.xlu0 %v1311, 96
        %v1448 = vpop.permute.xlu0 %1447
        %v1450 = vsel %vm1199, %v1446, 0
        %v1453 = vsel %vm1199, %v1448, 0
        %1455 = vmatpush.bf16.xpose.msra.mxu0 0
        %1456 = vmatpush.bf16.xpose.msra.mxu0 0
        %1457 = vmatpush.bf16.xpose.msra.mxu0 0
        %1458 = vmatpush.bf16.xpose.msra.mxu0 0
        %1459 = vmatpush.bf16.xpose.msra.mxu0 0
        %1460 = vmatpush.bf16.xpose.msra.mxu0 0
        %1461 = vmatpush.bf16.xpose.msra.mxu0 0
        %1462 = vmatpush.bf16.xpose.msra.mxu0 %v1453
        %1463 = vmatmul.bf16.gmra.mxu0 %v1450
        %v1464 = vpop.f32.mrf.mxu0
        %v1465 = vadd.f32 0.0, %v1464
        %v1466 = vpop.f32.mrf.mxu0
        %1467 = vdwg.mxu0
        %1468 = vrot.lane.b32.xlu0 %v1335, 96
        %v1469 = vpop.permute.xlu0 %1468
        %1470 = vrot.lane.b32.xlu0 %v1340, 96
        %v1471 = vpop.permute.xlu0 %1470
        %v1473 = vsel %vm1199, %v1469, 0
        %v1476 = vsel %vm1199, %v1471, 0
        %1478 = vmatpush.bf16.xpose.msra.mxu0 0
        %1479 = vmatpush.bf16.xpose.msra.mxu0 0
        %1480 = vmatpush.bf16.xpose.msra.mxu0 0
        %1481 = vmatpush.bf16.xpose.msra.mxu0 0
        %1482 = vmatpush.bf16.xpose.msra.mxu0 0
        %1483 = vmatpush.bf16.xpose.msra.mxu0 0
        %1484 = vmatpush.bf16.xpose.msra.mxu0 0
        %1485 = vmatpush.bf16.xpose.msra.mxu0 %v1476
        %1486 = vmatmul.bf16.gmra.mxu0 %v1473
        %v1487 = vpop.f32.mrf.mxu0
        %v1488 = vadd.f32 0.0, %v1487
        %v1489 = vpop.f32.mrf.mxu0
        %1490 = vdwg.mxu0
        %v1491 = vsel %vm1238, %v1465, -inf
        %1492 = vmax.xlane.f32.xlu0 %v1491
        %v1493 = vpop.xlane.xlu0 %1492
        %v1494 = vsel %vm1238, %v1488, -inf
        %1495 = vmax.xlane.f32.xlu0 %v1494
        %v1496 = vpop.xlane.xlu0 %1495
        %v1497 = vsub.f32 %v1465, %v1493
        %v1498 = vsub.f32 %v1488, %v1496
        %v1499 = vmul.f32 %v1497, 1.442695
        %v1500 = vpow.pop %v1499
        %v1501 = vmul.f32 %v1498, 1.442695
        %v1502 = vpow.pop %v1501
        %v1503 = vsel %vm1238, %v1500, 0.0
        %1504 = vadd.xlane.f32.xlu0 %v1503
        %v1505 = vpop.xlane.xlu0 %1504
        %v1506 = vsel %vm1238, %v1502, 0.0
        %1507 = vadd.xlane.f32.xlu0 %v1506
        %v1508 = vpop.xlane.xlu0 %1507
        %v1509 = vrcp.pop %v1505
        %v1510 = vrcp.pop %v1508
        %v1511 = vmul.f32 %v1500, %v1509
        %v1512 = vmul.f32 %v1502, %v1510
        %v1513 = vpack.c.bf16 %v1511, %v1511
        %v1514 = vpack.c.bf16 %v1512, %v1512
        %1515 = vrot.lane.b32.xlu0 %v1388, 96
        %v1516 = vpop.permute.xlu0 %1515
        %v1518 = vsel %vm1238, %v1513, 0
        %v1521 = vsel %vm1266, %v1516, 0
        %1523 = vmatpush.bf16.msra.mxu0 0
        %1524 = vmatpush.bf16.msra.mxu0 0
        %1525 = vmatpush.bf16.msra.mxu0 0
        %1526 = vmatpush.bf16.msra.mxu0 0
        %1527 = vmatpush.bf16.msra.mxu0 0
        %1528 = vmatpush.bf16.msra.mxu0 0
        %1529 = vmatpush.bf16.msra.mxu0 0
        %1530 = vmatpush.bf16.msra.mxu0 %v1521
        %1531 = vmatmul.bf16.gmra.mxu0 %v1518
        %v1532 = vpop.f32.mrf.mxu0
        %v1533 = vadd.f32 0.0, %v1532
        %v1534 = vpop.f32.mrf.mxu0
        %1535 = vdwg.mxu0
        %1536 = vrot.lane.b32.xlu0 %v1412, 96
        %v1537 = vpop.permute.xlu0 %1536
        %v1539 = vsel %vm1238, %v1514, 0
        %v1542 = vsel %vm1266, %v1537, 0
        %1544 = vmatpush.bf16.msra.mxu0 0
        %1545 = vmatpush.bf16.msra.mxu0 0
        %1546 = vmatpush.bf16.msra.mxu0 0
        %1547 = vmatpush.bf16.msra.mxu0 0
        %1548 = vmatpush.bf16.msra.mxu0 0
        %1549 = vmatpush.bf16.msra.mxu0 0
        %1550 = vmatpush.bf16.msra.mxu0 0
        %1551 = vmatpush.bf16.msra.mxu0 %v1542
        %1552 = vmatmul.bf16.gmra.mxu0 %v1539
        %v1553 = vpop.f32.mrf.mxu0
        %v1554 = vadd.f32 0.0, %v1553
        %v1555 = vpop.f32.mrf.mxu0
        %1556 = vdwg.mxu0
        %1559 = vrot.lane.b32.xlu0 %v1533, 32
        %v1560 = vpop.permute.xlu0 %1559
        %1561 = vrot.lane.b32.xlu0 %v1554, 32
        %v1562 = vpop.permute.xlu0 %1561
        %vm1565 = vcmask 392448
        %1566 = vst.msk [vmem:[#allocation3] sm:$0xff] %vm1565, %v1560
        %1567 = vst.msk [vmem:[#allocation3 + $0x8] sm:$0xff] %vm1565, %v1562
        %1568 = vrot.lane.b32.xlu0 %v1306, 80
        %v1569 = vpop.permute.xlu0 %1568
        %1570 = vrot.lane.b32.xlu0 %v1311, 80
        %v1571 = vpop.permute.xlu0 %1570
        %v1573 = vsel %vm1199, %v1569, 0
        %v1576 = vsel %vm1199, %v1571, 0
        %1578 = vmatpush.bf16.xpose.msra.mxu0 0
        %1579 = vmatpush.bf16.xpose.msra.mxu0 0
        %1580 = vmatpush.bf16.xpose.msra.mxu0 0
        %1581 = vmatpush.bf16.xpose.msra.mxu0 0
        %1582 = vmatpush.bf16.xpose.msra.mxu0 0
        %1583 = vmatpush.bf16.xpose.msra.mxu0 0
        %1584 = vmatpush.bf16.xpose.msra.mxu0 0
        %1585 = vmatpush.bf16.xpose.msra.mxu0 %v1576
        %1586 = vmatmul.bf16.gmra.mxu0 %v1573
        %v1587 = vpop.f32.mrf.mxu0
        %v1588 = vadd.f32 0.0, %v1587
        %v1589 = vpop.f32.mrf.mxu0
        %1590 = vdwg.mxu0
        %1591 = vrot.lane.b32.xlu0 %v1335, 80
        %v1592 = vpop.permute.xlu0 %1591
        %1593 = vrot.lane.b32.xlu0 %v1340, 80
        %v1594 = vpop.permute.xlu0 %1593
        %v1596 = vsel %vm1199, %v1592, 0
        %v1599 = vsel %vm1199, %v1594, 0
        %1601 = vmatpush.bf16.xpose.msra.mxu0 0
        %1602 = vmatpush.bf16.xpose.msra.mxu0 0
        %1603 = vmatpush.bf16.xpose.msra.mxu0 0
        %1604 = vmatpush.bf16.xpose.msra.mxu0 0
        %1605 = vmatpush.bf16.xpose.msra.mxu0 0
        %1606 = vmatpush.bf16.xpose.msra.mxu0 0
        %1607 = vmatpush.bf16.xpose.msra.mxu0 0
        %1608 = vmatpush.bf16.xpose.msra.mxu0 %v1599
        %1609 = vmatmul.bf16.gmra.mxu0 %v1596
        %v1610 = vpop.f32.mrf.mxu0
        %v1611 = vadd.f32 0.0, %v1610
        %v1612 = vpop.f32.mrf.mxu0
        %1613 = vdwg.mxu0
        %v1614 = vsel %vm1238, %v1588, -inf
        %1615 = vmax.xlane.f32.xlu0 %v1614
        %v1616 = vpop.xlane.xlu0 %1615
        %v1617 = vsel %vm1238, %v1611, -inf
        %1618 = vmax.xlane.f32.xlu0 %v1617
        %v1619 = vpop.xlane.xlu0 %1618
        %v1620 = vsub.f32 %v1588, %v1616
        %v1621 = vsub.f32 %v1611, %v1619
        %v1622 = vmul.f32 %v1620, 1.442695
        %v1623 = vpow.pop %v1622
        %v1624 = vmul.f32 %v1621, 1.442695
        %v1625 = vpow.pop %v1624
        %v1626 = vsel %vm1238, %v1623, 0.0
        %1627 = vadd.xlane.f32.xlu0 %v1626
        %v1628 = vpop.xlane.xlu0 %1627
        %v1629 = vsel %vm1238, %v1625, 0.0
        %1630 = vadd.xlane.f32.xlu0 %v1629
        %v1631 = vpop.xlane.xlu0 %1630
        %v1632 = vrcp.pop %v1628
        %v1633 = vrcp.pop %v1631
        %v1634 = vmul.f32 %v1623, %v1632
        %v1635 = vmul.f32 %v1625, %v1633
        %v1636 = vpack.c.bf16 %v1634, %v1634
        %v1637 = vpack.c.bf16 %v1635, %v1635
        %1638 = vrot.lane.b32.xlu0 %v1388, 80
        %v1639 = vpop.permute.xlu0 %1638
        %v1641 = vsel %vm1238, %v1636, 0
        %v1644 = vsel %vm1266, %v1639, 0
        %1646 = vmatpush.bf16.msra.mxu0 0
        %1647 = vmatpush.bf16.msra.mxu0 0
        %1648 = vmatpush.bf16.msra.mxu0 0
        %1649 = vmatpush.bf16.msra.mxu0 0
        %1650 = vmatpush.bf16.msra.mxu0 0
        %1651 = vmatpush.bf16.msra.mxu0 0
        %1652 = vmatpush.bf16.msra.mxu0 0
        %1653 = vmatpush.bf16.msra.mxu0 %v1644
        %1654 = vmatmul.bf16.gmra.mxu0 %v1641
        %v1655 = vpop.f32.mrf.mxu0
        %v1656 = vadd.f32 0.0, %v1655
        %v1657 = vpop.f32.mrf.mxu0
        %1658 = vdwg.mxu0
        %1659 = vrot.lane.b32.xlu0 %v1412, 80
        %v1660 = vpop.permute.xlu0 %1659
        %v1662 = vsel %vm1238, %v1637, 0
        %v1665 = vsel %vm1266, %v1660, 0
        %1667 = vmatpush.bf16.msra.mxu0 0
        %1668 = vmatpush.bf16.msra.mxu0 0
        %1669 = vmatpush.bf16.msra.mxu0 0
        %1670 = vmatpush.bf16.msra.mxu0 0
        %1671 = vmatpush.bf16.msra.mxu0 0
        %1672 = vmatpush.bf16.msra.mxu0 0
        %1673 = vmatpush.bf16.msra.mxu0 0
        %1674 = vmatpush.bf16.msra.mxu0 %v1665
        %1675 = vmatmul.bf16.gmra.mxu0 %v1662
        %v1676 = vpop.f32.mrf.mxu0
        %v1677 = vadd.f32 0.0, %v1676
        %v1678 = vpop.f32.mrf.mxu0
        %1679 = vdwg.mxu0
        %1682 = vrot.lane.b32.xlu0 %v1656, 48
        %v1683 = vpop.permute.xlu0 %1682
        %1684 = vrot.lane.b32.xlu0 %v1677, 48
        %v1685 = vpop.permute.xlu0 %1684
        %vm1688 = vcmask 523648
        %1689 = vst.msk [vmem:[#allocation3] sm:$0xff] %vm1688, %v1683
        %1690 = vst.msk [vmem:[#allocation3 + $0x8] sm:$0xff] %vm1688, %v1685
        %v1691 = vld [vmem:[#allocation3] sm:$0xff]
        %v1692 = vld [vmem:[#allocation3 + $0x8] sm:$0xff]
        %v1693 = vpack.c.bf16 %v1692, %v1691
        %v1694 = vld [vmem:[%s938] sm:$0xf]
        %v1695 = vld [vmem:[%s938 + $0x4] sm:$0xf]
        %v1696 = vld [vmem:[%s938 + $0x8] sm:$0xf]
        %v1697 = vld [vmem:[%s938 + $0xc] sm:$0xf]
        %v1698 = vld [vmem:[%s938 + $0x10] sm:$0xf]
        %v1699 = vld [vmem:[%s938 + $0x14] sm:$0xf]
        %v1700 = vld [vmem:[%s938 + $0x18] sm:$0xf]
        %v1701 = vld [vmem:[%s938 + $0x1c] sm:$0xf]
        %v1702 = vld [vmem:[%s941] sm:$0x1]
        %v1704 = vperm.slane %v1702, 0
        %v1714 = vunpack.c.l.b16 %v1694
        %v1715 = vunpack.c.l.b16 %v1695
        %v1716 = vunpack.c.l.b16 %v1696
        %v1717 = vunpack.c.l.b16 %v1697
        %v1718 = vunpack.c.l.b16 %v1698
        %v1719 = vunpack.c.l.b16 %v1699
        %v1720 = vunpack.c.l.b16 %v1700
        %v1721 = vunpack.c.l.b16 %v1701
        %v1722 = vpack.c.b16 %v1715, %v1714
        %v1723 = vpack.c.b16 %v1717, %v1716
        %v1724 = vpack.c.b16 %v1719, %v1718
        %v1725 = vpack.c.b16 %v1721, %v1720
        %v1731 = vsel %vm975, %v1693, 0
        %1733 = vmatpush.bf16.msra.mxu0 0
        %1734 = vmatpush.bf16.msra.mxu0 0
        %1735 = vmatpush.bf16.msra.mxu0 0
        %1736 = vmatpush.bf16.msra.mxu0 0
        %1737 = vmatpush.bf16.msra.mxu0 %v1725
        %1738 = vmatpush.bf16.msra.mxu0 %v1724
        %1739 = vmatpush.bf16.msra.mxu0 %v1723
        %1740 = vmatpush.bf16.msra.mxu0 %v1722
        %1741 = vmatmul.bf16.gmra.mxu0 %v1731
        %v1742 = vpop.f32.mrf.mxu0
        %v1743 = vadd.f32 %v1704, %v1742
        %v1744 = vpop.f32.mrf.mxu0
        %v1745 = vadd.f32 %v1704, %v1744
        %1746 = vdwg.mxu0
        %v1747 = vadd.f32 %v973, %v1743
        %v1748 = vadd.f32 %v974, %v1745
        %v1749 = vsel %vm975, %v1747, 0.0
        %1750 = vadd.xlane.f32.xlu0 %v1749
        %v1751 = vpop.xlane.xlu0 %1750
        %v1752 = vsel %vm975, %v1748, 0.0
        %1753 = vadd.xlane.f32.xlu0 %v1752
        %v1754 = vpop.xlane.xlu0 %1753
        %v1755 = vmul.f32 %v1751, %v988
        %v1756 = vmul.f32 %v1754, %v988
        %v1757 = vsub.f32 %v1747, %v1755
        %v1758 = vsub.f32 %v1748, %v1756
        %v1759 = vmul.f32 %v1757, %v1757
        %v1760 = vmul.f32 %v1758, %v1758
        %v1761 = vsel %vm975, %v1759, 0.0
        %1762 = vadd.xlane.f32.xlu0 %v1761
        %v1763 = vpop.xlane.xlu0 %1762
        %v1764 = vsel %vm975, %v1760, 0.0
        %1765 = vadd.xlane.f32.xlu0 %v1764
        %v1766 = vpop.xlane.xlu0 %1765
        %v1767 = vmul.f32 %v1763, %v988
        %v1768 = vmul.f32 %v1766, %v988
        %v1769 = vadd.f32 %v1767, 1e-05
        %v1770 = vadd.f32 %v1768, 1e-05
        %v1771 = vrsqrt.pop %v1769
        %v1772 = vmul.f32 %v1771, %v1769
        %v1773 = vmul.f32 %v1772, %v1771
        %v1774 = vmul.f32 0.5, %v1773
        %v1775 = vsub.f32 1.5, %v1774
        %v1776 = vmul.f32 %v1771, %v1775
        %vm1777 = vweird.f32 %v1769
        %vm1778 = vweird.f32 %v1771
        %vm1779 = vmor %vm1777, %vm1778
        %v1780 = vsel %vm1779, %v1771, %v1776
        %v1781 = vrsqrt.pop %v1770
        %v1782 = vmul.f32 %v1781, %v1770
        %v1783 = vmul.f32 %v1782, %v1781
        %v1784 = vmul.f32 0.5, %v1783
        %v1785 = vsub.f32 1.5, %v1784
        %v1786 = vmul.f32 %v1781, %v1785
        %vm1787 = vweird.f32 %v1770
        %vm1788 = vweird.f32 %v1781
        %vm1789 = vmor %vm1787, %vm1788
        %v1790 = vsel %vm1789, %v1781, %v1786
        %v1791 = vmul.f32 %v1757, %v1780
        %v1792 = vmul.f32 %v1758, %v1790
        %v1793 = vld [vmem:[%s944] sm:$0x1]
        %v1795 = vperm.slane %v1793, 0
        %v1797 = vmul.f32 %v1791, %v1795
        %v1798 = vmul.f32 %v1792, %v1795
        %v1799 = vld [vmem:[%s799] sm:$0x1]
        %v1801 = vperm.slane %v1799, 0
        %v1803 = vadd.f32 %v1797, %v1801
        %v1804 = vadd.f32 %v1798, %v1801
        %v1805 = vpack.c.bf16 %v1804, %v1803
        %v1806 = vld [vmem:[%s949] sm:$0xff]
        %v1807 = vld [vmem:[%s949 + $0x8] sm:$0xff]
        %v1808 = vld [vmem:[%s949 + $0x10] sm:$0xff]
        %v1809 = vld [vmem:[%s949 + $0x18] sm:$0xff]
        %v1810 = vld [vmem:[%s949 + $0x20] sm:$0xff]
        %v1811 = vld [vmem:[%s949 + $0x28] sm:$0xff]
        %v1812 = vld [vmem:[%s949 + $0x30] sm:$0xff]
        %v1813 = vld [vmem:[%s949 + $0x38] sm:$0xff]
        %v1814 = vld [vmem:[%s953] sm:$0x3]
        %v1816 = vperm.slane %v1814, 0
        %v1817 = vperm.slane %v1814, 1
        %v1828 = vunpack.c.l.b16 %v1806
        %v1829 = vunpack.c.h.b16 %v1806
        %v1830 = vunpack.c.l.b16 %v1807
        %v1831 = vunpack.c.h.b16 %v1807
        %v1832 = vunpack.c.l.b16 %v1808
        %v1833 = vunpack.c.h.b16 %v1808
        %v1834 = vunpack.c.l.b16 %v1809
        %v1835 = vunpack.c.h.b16 %v1809
        %v1836 = vunpack.c.l.b16 %v1810
        %v1837 = vunpack.c.h.b16 %v1810
        %v1838 = vunpack.c.l.b16 %v1811
        %v1839 = vunpack.c.h.b16 %v1811
        %v1840 = vunpack.c.l.b16 %v1812
        %v1841 = vunpack.c.h.b16 %v1812
        %v1842 = vunpack.c.l.b16 %v1813
        %v1843 = vunpack.c.h.b16 %v1813
        %v1844 = vpack.c.b16 %v1830, %v1828
        %v1845 = vpack.c.b16 %v1831, %v1829
        %v1846 = vpack.c.b16 %v1834, %v1832
        %v1847 = vpack.c.b16 %v1835, %v1833
        %v1848 = vpack.c.b16 %v1838, %v1836
        %v1849 = vpack.c.b16 %v1839, %v1837
        %v1850 = vpack.c.b16 %v1842, %v1840
        %v1851 = vpack.c.b16 %v1843, %v1841
        %v1861 = vsel %vm975, %v1805, 0
        %1863 = vmatpush.bf16.msra.mxu0 0
        %1864 = vmatpush.bf16.msra.mxu0 0
        %1865 = vmatpush.bf16.msra.mxu0 0
        %1866 = vmatpush.bf16.msra.mxu0 0
        %1867 = vmatpush.bf16.msra.mxu0 %v1850
        %1868 = vmatpush.bf16.msra.mxu0 %v1848
        %1869 = vmatpush.bf16.msra.mxu0 %v1846
        %1870 = vmatpush.bf16.msra.mxu0 %v1844
        %1871 = vmatmul.bf16.gmra.mxu0 %v1861
        %v1872 = vpop.f32.mrf.mxu0
        %v1873 = vadd.f32 %v1816, %v1872
        %v1874 = vpop.f32.mrf.mxu0
        %v1875 = vadd.f32 %v1816, %v1874
        %1876 = vdwg.mxu0
        %1877 = vmatpush.bf16.msra.mxu0 0
        %1878 = vmatpush.bf16.msra.mxu0 0
        %1879 = vmatpush.bf16.msra.mxu0 0
        %1880 = vmatpush.bf16.msra.mxu0 0
        %1881 = vmatpush.bf16.msra.mxu0 %v1851
        %1882 = vmatpush.bf16.msra.mxu0 %v1849
        %1883 = vmatpush.bf16.msra.mxu0 %v1847
        %1884 = vmatpush.bf16.msra.mxu0 %v1845
        %1885 = vmatmul.bf16.gmra.mxu0 %v1861
        %v1886 = vpop.f32.mrf.mxu0
        %v1887 = vadd.f32 %v1817, %v1886
        %v1888 = vpop.f32.mrf.mxu0
        %v1889 = vadd.f32 %v1817, %v1888
        %1890 = vdwg.mxu0
        %v1891 = vmul.f32 %v1873, 1.702
        %v1892 = vmul.f32 %v1887, 1.702
        %v1893 = vmul.f32 %v1875, 1.702
        %v1894 = vmul.f32 %v1889, 1.702
        %v1895 = vxor.u32 %v1891, 2147483648
        %v1896 = vxor.u32 %v1892, 2147483648
        %v1897 = vxor.u32 %v1893, 2147483648
        %v1898 = vxor.u32 %v1894, 2147483648
        %v1899 = vmul.f32 %v1895, 1.442695
        %v1900 = vpow.pop %v1899
        %v1901 = vmul.f32 %v1896, 1.442695
        %v1902 = vpow.pop %v1901
        %v1903 = vmul.f32 %v1897, 1.442695
        %v1904 = vpow.pop %v1903
        %v1905 = vmul.f32 %v1898, 1.442695
        %v1906 = vpow.pop %v1905
        %v1907 = vadd.f32 %v1900, 1.0
        %v1908 = vadd.f32 %v1902, 1.0
        %v1909 = vadd.f32 %v1904, 1.0
        %v1910 = vadd.f32 %v1906, 1.0
        %v1911 = vrcp.pop %v1907
        %v1912 = vmul.f32 %v1907, %v1911
        %v1913 = vsub.f32 1.0, %v1912
        %v1914 = vmul.f32 %v1911, %v1913
        %v1915 = vadd.f32 %v1911, %v1914
        %vm1916 = vweird.f32 %v1907
        %vm1917 = vweird.f32 %v1911
        %vm1918 = vmor %vm1916, %vm1917
        %v1919 = vsel %vm1918, %v1911, %v1915
        %v1920 = vand.u32 2147483647, %v1907
        %vm1921 = vcmp.eq.f32.partialorder %v1920, 8.507059e+37
        %v1922 = vand.u32 %v1907, 2147483648
        %v1923 = vor.u32 1.1754944e-38, %v1922
        %v1924 = vsel %vm1921, %v1923, %v1919
        %v1925 = vmul.f32 1.0, %v1924
        %v1926 = vrcp.pop %v1908
        %v1927 = vmul.f32 %v1908, %v1926
        %v1928 = vsub.f32 1.0, %v1927
        %v1929 = vmul.f32 %v1926, %v1928
        %v1930 = vadd.f32 %v1926, %v1929
        %vm1931 = vweird.f32 %v1908
        %vm1932 = vweird.f32 %v1926
        %vm1933 = vmor %vm1931, %vm1932
        %v1934 = vsel %vm1933, %v1926, %v1930
        %v1935 = vand.u32 2147483647, %v1908
        %vm1936 = vcmp.eq.f32.partialorder %v1935, 8.507059e+37
        %v1937 = vand.u32 %v1908, 2147483648
        %v1938 = vor.u32 1.1754944e-38, %v1937
        %v1939 = vsel %vm1936, %v1938, %v1934
        %v1940 = vmul.f32 1.0, %v1939
        %v1941 = vrcp.pop %v1909
        %v1942 = vmul.f32 %v1909, %v1941
        %v1943 = vsub.f32 1.0, %v1942
        %v1944 = vmul.f32 %v1941, %v1943
        %v1945 = vadd.f32 %v1941, %v1944
        %vm1946 = vweird.f32 %v1909
        %vm1947 = vweird.f32 %v1941
        %vm1948 = vmor %vm1946, %vm1947
        %v1949 = vsel %vm1948, %v1941, %v1945
        %v1950 = vand.u32 2147483647, %v1909
        %vm1951 = vcmp.eq.f32.partialorder %v1950, 8.507059e+37
        %v1952 = vand.u32 %v1909, 2147483648
        %v1953 = vor.u32 1.1754944e-38, %v1952
        %v1954 = vsel %vm1951, %v1953, %v1949
        %v1955 = vmul.f32 1.0, %v1954
        %v1956 = vrcp.pop %v1910
        %v1957 = vmul.f32 %v1910, %v1956
        %v1958 = vsub.f32 1.0, %v1957
        %v1959 = vmul.f32 %v1956, %v1958
        %v1960 = vadd.f32 %v1956, %v1959
        %vm1961 = vweird.f32 %v1910
        %vm1962 = vweird.f32 %v1956
        %vm1963 = vmor %vm1961, %vm1962
        %v1964 = vsel %vm1963, %v1956, %v1960
        %v1965 = vand.u32 2147483647, %v1910
        %vm1966 = vcmp.eq.f32.partialorder %v1965, 8.507059e+37
        %v1967 = vand.u32 %v1910, 2147483648
        %v1968 = vor.u32 1.1754944e-38, %v1967
        %v1969 = vsel %vm1966, %v1968, %v1964
        %v1970 = vmul.f32 1.0, %v1969
        %v1971 = vmul.f32 %v1873, %v1925
        %v1972 = vmul.f32 %v1887, %v1940
        %v1973 = vmul.f32 %v1875, %v1955
        %v1974 = vmul.f32 %v1889, %v1970
        %v1975 = vpack.c.bf16 %v1973, %v1971
        %v1976 = vpack.c.bf16 %v1974, %v1972
        %v1977 = vld [vmem:[%s958] sm:$0xf]
        %v1978 = vld [vmem:[%s958 + $0x4] sm:$0xf]
        %v1979 = vld [vmem:[%s958 + $0x8] sm:$0xf]
        %v1980 = vld [vmem:[%s958 + $0xc] sm:$0xf]
        %v1981 = vld [vmem:[%s958 + $0x10] sm:$0xf]
        %v1982 = vld [vmem:[%s958 + $0x14] sm:$0xf]
        %v1983 = vld [vmem:[%s958 + $0x18] sm:$0xf]
        %v1984 = vld [vmem:[%s958 + $0x1c] sm:$0xf]
        %v1985 = vld [vmem:[%s958 + $0x20] sm:$0xf]
        %v1986 = vld [vmem:[%s958 + $0x24] sm:$0xf]
        %v1987 = vld [vmem:[%s958 + $0x28] sm:$0xf]
        %v1988 = vld [vmem:[%s958 + $0x2c] sm:$0xf]
        %v1989 = vld [vmem:[%s958 + $0x30] sm:$0xf]
        %v1990 = vld [vmem:[%s958 + $0x34] sm:$0xf]
        %v1991 = vld [vmem:[%s958 + $0x38] sm:$0xf]
        %v1992 = vld [vmem:[%s958 + $0x3c] sm:$0xf]
        %v1993 = vld [vmem:[%s958 + $0x40] sm:$0xf]
        %v1994 = vld [vmem:[%s958 + $0x44] sm:$0xf]
        %v1995 = vld [vmem:[%s958 + $0x48] sm:$0xf]
        %v1996 = vld [vmem:[%s958 + $0x4c] sm:$0xf]
        %v1997 = vld [vmem:[%s958 + $0x50] sm:$0xf]
        %v1998 = vld [vmem:[%s958 + $0x54] sm:$0xf]
        %v1999 = vld [vmem:[%s958 + $0x58] sm:$0xf]
        %v2000 = vld [vmem:[%s958 + $0x5c] sm:$0xf]
        %v2001 = vld [vmem:[%s958 + $0x60] sm:$0xf]
        %v2002 = vld [vmem:[%s958 + $0x64] sm:$0xf]
        %v2003 = vld [vmem:[%s958 + $0x68] sm:$0xf]
        %v2004 = vld [vmem:[%s958 + $0x6c] sm:$0xf]
        %v2005 = vld [vmem:[%s958 + $0x70] sm:$0xf]
        %v2006 = vld [vmem:[%s958 + $0x74] sm:$0xf]
        %v2007 = vld [vmem:[%s958 + $0x78] sm:$0xf]
        %v2008 = vld [vmem:[%s958 + $0x7c] sm:$0xf]
        %v2009 = vld [vmem:[%s961] sm:$0x1]
        %v2011 = vperm.slane %v2009, 0
        %v2045 = vunpack.c.l.b16 %v1977
        %v2046 = vunpack.c.l.b16 %v1978
        %v2047 = vunpack.c.l.b16 %v1979
        %v2048 = vunpack.c.l.b16 %v1980
        %v2049 = vunpack.c.l.b16 %v1981
        %v2050 = vunpack.c.l.b16 %v1982
        %v2051 = vunpack.c.l.b16 %v1983
        %v2052 = vunpack.c.l.b16 %v1984
        %v2053 = vunpack.c.l.b16 %v1985
        %v2054 = vunpack.c.l.b16 %v1986
        %v2055 = vunpack.c.l.b16 %v1987
        %v2056 = vunpack.c.l.b16 %v1988
        %v2057 = vunpack.c.l.b16 %v1989
        %v2058 = vunpack.c.l.b16 %v1990
        %v2059 = vunpack.c.l.b16 %v1991
        %v2060 = vunpack.c.l.b16 %v1992
        %v2061 = vunpack.c.l.b16 %v1993
        %v2062 = vunpack.c.l.b16 %v1994
        %v2063 = vunpack.c.l.b16 %v1995
        %v2064 = vunpack.c.l.b16 %v1996
        %v2065 = vunpack.c.l.b16 %v1997
        %v2066 = vunpack.c.l.b16 %v1998
        %v2067 = vunpack.c.l.b16 %v1999
        %v2068 = vunpack.c.l.b16 %v2000
        %v2069 = vunpack.c.l.b16 %v2001
        %v2070 = vunpack.c.l.b16 %v2002
        %v2071 = vunpack.c.l.b16 %v2003
        %v2072 = vunpack.c.l.b16 %v2004
        %v2073 = vunpack.c.l.b16 %v2005
        %v2074 = vunpack.c.l.b16 %v2006
        %v2075 = vunpack.c.l.b16 %v2007
        %v2076 = vunpack.c.l.b16 %v2008
        %v2077 = vpack.c.b16 %v2046, %v2045
        %v2078 = vpack.c.b16 %v2048, %v2047
        %v2079 = vpack.c.b16 %v2050, %v2049
        %v2080 = vpack.c.b16 %v2052, %v2051
        %v2081 = vpack.c.b16 %v2054, %v2053
        %v2082 = vpack.c.b16 %v2056, %v2055
        %v2083 = vpack.c.b16 %v2058, %v2057
        %v2084 = vpack.c.b16 %v2060, %v2059
        %v2085 = vpack.c.b16 %v2062, %v2061
        %v2086 = vpack.c.b16 %v2064, %v2063
        %v2087 = vpack.c.b16 %v2066, %v2065
        %v2088 = vpack.c.b16 %v2068, %v2067
        %v2089 = vpack.c.b16 %v2070, %v2069
        %v2090 = vpack.c.b16 %v2072, %v2071
        %v2091 = vpack.c.b16 %v2074, %v2073
        %v2092 = vpack.c.b16 %v2076, %v2075
        %2109 = vmatpush.bf16.msra.mxu0 %v2084
        %2110 = vmatpush.bf16.msra.mxu0 %v2083
        %2111 = vmatpush.bf16.msra.mxu0 %v2082
        %2112 = vmatpush.bf16.msra.mxu0 %v2081
        %2113 = vmatpush.bf16.msra.mxu0 %v2080
        %2114 = vmatpush.bf16.msra.mxu0 %v2079
        %2115 = vmatpush.bf16.msra.mxu0 %v2078
        %2116 = vmatpush.bf16.msra.mxu0 %v2077
        %2117 = vmatmul.bf16.gmra.mxu0 %v1975
        %v2118 = vpop.f32.mrf.mxu0
        %v2119 = vadd.f32 %v2011, %v2118
        %v2120 = vpop.f32.mrf.mxu0
        %v2121 = vadd.f32 %v2011, %v2120
        %2122 = vdwg.mxu0
        %2123 = vmatpush.bf16.msra.mxu0 %v2092
        %2124 = vmatpush.bf16.msra.mxu0 %v2091
        %2125 = vmatpush.bf16.msra.mxu0 %v2090
        %2126 = vmatpush.bf16.msra.mxu0 %v2089
        %2127 = vmatpush.bf16.msra.mxu0 %v2088
        %2128 = vmatpush.bf16.msra.mxu0 %v2087
        %2129 = vmatpush.bf16.msra.mxu0 %v2086
        %2130 = vmatpush.bf16.msra.mxu0 %v2085
        %2131 = vmatmul.bf16.gmra.mxu0 %v1976
        %v2132 = vpop.f32.mrf.mxu0
        %v2133 = vadd.f32 %v2119, %v2132
        %v2134 = vpop.f32.mrf.mxu0
        %v2135 = vadd.f32 %v2121, %v2134
        %2136 = vdwg.mxu0
        %v2137 = vadd.f32 %v1747, %v2133
        %v2138 = vadd.f32 %v1748, %v2135
        %2139 = vst.msk [vmem:[#allocation2] sm:$0xff] %vm975, %v2137
        %2140 = vst.msk [vmem:[#allocation2 + $0x8] sm:$0xff] %vm975, %v2138
        %p2141 = scmp.eq.s32.totalorder %s48, 1
        // Predicated region
        $region121: #{tpu_custom_call.1} parent=87 // pred_check
          %p2142 = pneg %p2141
        $region122: #{tpu_custom_call.1} parent=87 // pred_check_branch
          %2144 = sbr.rel (%p2142) target = $region124
        $region123: #{tpu_custom_call.1} parent=87 // pred_region
          %2145 = vst.msk [vmem:[%s917] sm:$0xff] %vm975, %v2137
          %2146 = vst.msk [vmem:[%s917 + $0x8] sm:$0xff] %vm975, %v2138
        $region124: #{tpu_custom_call.1} parent=87 // pred_fallthru
          _
        %s2147 = sand.u32 %s505, 1
        %s2148 = scalar_lea.sflag [#allocation6], %s2147
        %s2149 = sand.u32 %s505, 1
        %s2150 = smul.addr %s2149, 16
        %s2151 = scalar_lea.vmem [#allocation16], %s2150
        // Predicated region
        $region125: #{tpu_custom_call.1} parent=87 // pred_check
          %p2152 = pneg %p515
        $region126: #{tpu_custom_call.1} parent=87 // pred_check_branch
          %2154 = sbr.rel (%p2152) target = $region128
        $region127: #{tpu_custom_call.1} parent=87 // pred_region
          %s2155 = smul.u32 2, %s47
          %2157 = vsyncadd %s2148, 0
          %s2158 = smul.addr %s2155, 8
          %s2159 = scalar_lea.hbm %s17, %s2158
          %s2160 = sshll.u32 %s2151, 4
          %s2161 = int_to_ptr.vmem [resolvable:$true] %s2160
          %s2162 = sshll.u32 %s2159, 4
          %s2163 = int_to_ptr.hbm [resolvable:$true] %s2162
          %2168 = dma.vmem_to_hbm [thread:$0]  %s2161, 256, %s2163, %s2148, 128, 128, 8
        $region128: #{tpu_custom_call.1} parent=87 // pred_fallthru
          _
      $region88: #{tpu_custom_call.1} parent=5 // pred_fallthru
        _
      %p2169 = scmp.le.s32.totalorder 2, %s38
      // Predicated region
      $region129: #{tpu_custom_call.1} parent=5 // pred_check
        %p2170 = pneg %p2169
      $region130: #{tpu_custom_call.1} parent=5 // pred_check_branch
        %2172 = sbr.rel (%p2170) target = $region132
      $region131: #{tpu_custom_call.1} parent=5 // pred_region
        %s2173 = ssub.s32 %s38, 2
        // Predicated region
        $region133: #{tpu_custom_call.1} parent=131 // pred_check
          %p2174 = pneg %p521
        $region134: #{tpu_custom_call.1} parent=131 // pred_check_branch
          %2176 = sbr.rel (%p2174) target = $region136
        $region135: #{tpu_custom_call.1} parent=131 // pred_region
          %s2177 = sand.u32 %s506, 1
          %s2178 = scalar_lea.sflag [#allocation6], %s2177
          %s2179 = sand.u32 %s506, 1
          %s2180 = smul.addr %s2179, 16
          %s2181 = scalar_lea.vmem [#allocation16], %s2180
          %2183 = dma.done %s2178, 256
        $region136: #{tpu_custom_call.1} parent=131 // pred_fallthru
          _
      $region132: #{tpu_custom_call.1} parent=5 // pred_fallthru
        _
    $region6: #{tpu_custom_call.1} parent=1 // loop_footer
      %s42 = sadd.s32 1, %s38
    $region7: #{tpu_custom_call.1} parent=1 // loop_footer_branch
      %37 = sbr.rel target = $region3
    $region8: #{tpu_custom_call.1} parent=1 // loop_exit
      _
    %2184 = vsyncpa [#allocation5], 1
    %s2185 = scalar_lea.sflag [#allocation5], 1
    %2186 = vsyncpa %s2185, 1
    %2187 = vsyncpa [#allocation8], 1
    %s2188 = scalar_lea.sflag [#allocation8], 1
    %2189 = vsyncpa %s2188, 1
    %2190 = vsyncpa [#allocation11], 1
    %s2191 = scalar_lea.sflag [#allocation11], 1
    %2192 = vsyncpa %s2191, 1
    %2193 = vsyncpa [#allocation14], 1
    %s2194 = scalar_lea.sflag [#allocation14], 1
    %2195 = vsyncpa %s2194, 1
    %2196 = vsyncpa [#allocation6], 1
    %s2197 = scalar_lea.sflag [#allocation6], 1
    %2198 = vsyncpa %s2197, 1

</llo_original>
